<compile_context>
chip_gen: v7x
topology: tpu7x:2x2x1
jax: 0.10.0
libtpu: 0.0.40
codegen_flags: <defaults>
</compile_context>

<pallas_src>
import functools

import jax
import jax.numpy as jnp
from jax import lax
from jax.experimental import pallas as pl
from jax.experimental.pallas import tpu as pltpu

MIB = 2 ** 20


# --------------------------------------------------------------------------
# helpers: VMEM budget & tiling
# --------------------------------------------------------------------------
def _round_up(x, m):
    return (x + m - 1) // m * m


def _vmem_capacity_bytes():
    """Physical VMEM per core; falls back to the smallest (v7x, 64 MiB)."""
    try:
        cap = int(pltpu.get_tpu_info().vmem_capacity_bytes)
        if cap > 0:
            return cap
    except Exception:
        pass
    return 64 * MIB


def _vmem_budget(cap):
    # ~40 MiB on v7x (64 MiB physical), ~96 MiB on v5e/v6e (128 MiB physical)
    return min(max(int(0.625 * cap), cap - 32 * MIB), cap - 4 * MIB)


def _gru_vmem(bchunk, t_chunk, Ep, Hp):
    """Conservative per-grid-step VMEM footprint of the GRU kernel."""
    fixed = (2 * (Ep + Hp) * 3 * Hp * 2      # w_i, w_h bf16 blocks (x2 buffers)
             + bchunk * Hp * 4               # h carry scratch (f32)
             + 2 * bchunk * 10 * Hp * 4      # in-flight per-step values
             + 2 * (4 * Hp + Hp + bchunk) * 4)   # bias / lens blocks
    per_t = bchunk * (2 * Ep * 2             # x block, bf16, double-buffered
                      + 2 * Hp * 2)          # out block, bf16, double-buffered
    return fixed + t_chunk * per_t


def _gru_chunks(T, Bp, Ep, Hp, budget):
    """Pick (bchunk, t_chunk) for the recurrence from the VMEM budget."""
    # 256 fills the 256-wide MXU M-dim of v6e/v7x for large batches.
    bchunk = 256 if Bp >= 256 else min(Bp, 128)
    while True:
        fixed = _gru_vmem(bchunk, 0, Ep, Hp)
        per_t = _gru_vmem(bchunk, 1, Ep, Hp) - fixed
        t_max = (budget - fixed) // per_t
        if t_max >= 1 or bchunk <= 8:
            break
        bchunk = max(8, bchunk // 2)         # graceful fallback for huge H
    t_chunk = int(max(1, min(T, t_max, 128)))
    return int(bchunk), t_chunk


# --------------------------------------------------------------------------
# Pallas kernels
# --------------------------------------------------------------------------
def _linear_kernel(x_ref, w_ref, b_ref, o_ref):
    """One (TM, TN) tile of o = x @ W + b."""
    o_ref[...] = (
        jnp.dot(x_ref[...], w_ref[...], preferred_element_type=jnp.float32)
        + b_ref[...]).astype(o_ref.dtype)


def _gru_kernel(x_ref, wi_ref, bi_ref, wh_ref, bhn_ref, lens_ref, out_ref,
                h_ref):
    """Fused input-projection + GRU recurrence over one (time, batch) block.

    x_ref    : (t_chunk, bchunk, Ep) bf16   embedded inputs (time-major)
    wi_ref   : (Ep, 3Hp) bf16               fused input weights [Wir|Wiz|Win]
    bi_ref   : (1, 3Hp)  f32                fused input bias    [b_r|b_z|b_in]
    wh_ref   : (Hp, 3Hp) bf16               fused hidden weights [Whr|Whz|Whn]
    bhn_ref  : (1, Hp)   f32                b_hn (lives inside r * (...))
    lens_ref : (bchunk, 1) i32              valid lengths
    out_ref  : (t_chunk, bchunk, Hp) bf16   masked per-step hidden states
    h_ref    : (bchunk, Hp) f32 scratch     hidden-state carry across chunks

    INVARIANT: the time axis must stay the innermost ("arbitrary") grid axis;
    h_ref carries state across time chunks and is reset at ti == 0.
    """
    ti = pl.program_id(1)
    t_chunk = x_ref.shape[0]
    Hp = h_ref.shape[-1]

    @pl.when(ti == 0)
    def _():
        h_ref[...] = jnp.zeros_like(h_ref)

    wi = wi_ref[...]            # weights resident across the chunk
    wh = wh_ref[...]
    bi = bi_ref[...]            # (1, 3Hp) broadcast-add; never materialized
    bhn = bhn_ref[...]          # (1, Hp)  broadcast-add; never materialized
    lens = lens_ref[...]        # (bchunk, 1) i32
    t0 = ti * t_chunk

    def step(s, h):
        # Input projection: independent of h, so under unrolling it overlaps
        # the previous step's serial matmul->gate chain (and there is no HBM
        # round trip of a 3Hp-wide f32 activation tensor).
        xp = jnp.dot(x_ref[s], wi, preferred_element_type=jnp.float32) + bi
        hp = jnp.dot(h.astype(wh.dtype), wh,
                     preferred_element_type=jnp.float32)
        r = jax.nn.sigmoid(xp[:, 0 * Hp:1 * Hp] + hp[:, 0 * Hp:1 * Hp])
        z = jax.nn.sigmoid(xp[:, 1 * Hp:2 * Hp] + hp[:, 1 * Hp:2 * Hp])
        n = jnp.tanh(xp[:, 2 * Hp:3 * Hp] + r * (hp[:, 2 * Hp:3 * Hp] + bhn))
        h_new = (1.0 - z) * n + z * h
        valid = ((t0 + s) < lens).astype(jnp.float32)        # (bchunk, 1)
        out_ref[s] = (h_new * valid).astype(out_ref.dtype)   # 0 past length
        return h_new

    unroll = True if t_chunk <= 16 else 4
    h_ref[...] = lax.fori_loop(0, t_chunk, step, h_ref[...], unroll=unroll)


# --------------------------------------------------------------------------
# pallas_call wrappers
# --------------------------------------------------------------------------
def _tiled_linear(x, w, b, *, out_dtype, budget, cap):
    """o = x @ w + b with a ("parallel","parallel") row/col grid.

    Caller guarantees rows % 8 == 0, cols % 128 == 0, K % 128 == 0.
    Row tile is sized from the VMEM budget (big tiles stop re-streaming W).
    """
    rows, K = x.shape
    cols = w.shape[1]
    xb, wb, bb = x.dtype.itemsize, w.dtype.itemsize, b.dtype.itemsize
    ob = jnp.dtype(out_dtype).itemsize

    tn = next(c for c in (512, 256, 128) if cols % c == 0)

    def need_for(tm):
        return 2 * (tm * K * xb + K * tn * wb + tn * bb + tm * tn * ob)

    tm = 8
    for cand in (4096, 2048, 1024, 512, 256, 128, 64, 32, 16, 8):
        if rows % cand == 0 and need_for(cand) <= budget:
            tm = cand
            break
    need = need_for(tm)
    limit = int(min(cap, max(need + 4 * MIB, 16 * MIB)))
    assert need <= limit, (need, limit)

    grid = (rows // tm, cols // tn)
    flops = 2 * rows * K * cols
    bytes_accessed = (rows * K * xb + K * cols * wb + cols * bb
                      + rows * cols * ob)

    return pl.pallas_call(
        _linear_kernel,
        out_shape=jax.ShapeDtypeStruct((rows, cols), out_dtype),
        grid=grid,
        in_specs=[pl.BlockSpec((tm, K), lambda i, j: (i, 0)),
                  pl.BlockSpec((K, tn), lambda i, j: (0, j)),
                  pl.BlockSpec((1, tn), lambda i, j: (0, j))],
        out_specs=pl.BlockSpec((tm, tn), lambda i, j: (i, j)),
        compiler_params=pltpu.CompilerParams(
            dimension_semantics=("parallel", "parallel"),
            vmem_limit_bytes=limit),
        cost_estimate=pl.CostEstimate(flops=flops, transcendentals=0,
                                      bytes_accessed=bytes_accessed),
    )(x, w, b)


def _gru_scan(x_tm, w_i, b_i, w_h, b_hn, lens, *, bchunk, t_chunk, cap):
    """Fused input-projection + GRU recurrence over (T_p, Bp)."""
    T_p, Bp, Ep = x_tm.shape
    H3 = w_h.shape[1]
    Hp = H3 // 3
    grid = (Bp // bchunk, T_p // t_chunk)

    need = _gru_vmem(bchunk, t_chunk, Ep, Hp)
    limit = int(min(cap, max(need + 8 * MIB, 16 * MIB)))
    assert need <= limit, (need, limit)

    flops = 2 * T_p * Bp * (Ep + Hp) * 3 * Hp + 12 * T_p * Bp * Hp
    transc = 3 * T_p * Bp * Hp
    bytes_accessed = (x_tm.size * 2 + T_p * Bp * Hp * 2
                      + (w_i.size + w_h.size) * 2
                      + (b_i.size + b_hn.size + lens.size) * 4)

    # TODO(synk): on v7x with a single batch block (small-batch inference) the
    # "parallel" batch axis leaves the second TensorCore idle during the
    # recurrence; a core_map split of the 3Hp gate columns could use both TCs.
    return pl.pallas_call(
        _gru_kernel,
        out_shape=jax.ShapeDtypeStruct((T_p, Bp, Hp), jnp.bfloat16),
        grid=grid,
        in_specs=[
            pl.BlockSpec((t_chunk, bchunk, Ep), lambda b, t: (t, b, 0)),
            pl.BlockSpec((Ep, H3), lambda b, t: (0, 0)),
            pl.BlockSpec((1, H3), lambda b, t: (0, 0)),
            pl.BlockSpec((Hp, H3), lambda b, t: (0, 0)),
            pl.BlockSpec((1, Hp), lambda b, t: (0, 0)),
            pl.BlockSpec((bchunk, 1), lambda b, t: (b, 0)),
        ],
        out_specs=pl.BlockSpec((t_chunk, bchunk, Hp),
                               lambda b, t: (t, b, 0)),
        scratch_shapes=[pltpu.VMEM((bchunk, Hp), jnp.float32)],
        compiler_params=pltpu.CompilerParams(
            dimension_semantics=("parallel", "arbitrary"),
            vmem_limit_bytes=limit),
        cost_estimate=pl.CostEstimate(flops=flops, transcendentals=transc,
                                      bytes_accessed=bytes_accessed),
    )(x_tm, w_i, b_i, w_h, b_hn, lens)


# --------------------------------------------------------------------------
# Forward wrapper (embedding gather, layout/padding glue in plain JAX)
# --------------------------------------------------------------------------
def gru4rec_forward(params, x_ids, x_lens, *, max_length=200):
    B, T = x_ids.shape
    emb = params["embedding"]
    E = emb.shape[1]
    H = params["w_hr"].shape[0]
    V = params["w_out"].shape[1]                 # output_dim + 1

    f32, bf16 = jnp.float32, jnp.bfloat16

    # padded / tiled dims: lanes -> 128, sublanes -> 8
    Ep = _round_up(E, 128)
    Hp = _round_up(H, 128)
    Vp = _round_up(V, 128)
    Bp = _round_up(B, 8)

    cap = _vmem_capacity_bytes()
    budget = _vmem_budget(cap)
    bchunk, t_chunk = _gru_chunks(T, Bp, Ep, Hp, budget)
    Bp = _round_up(Bp, bchunk)
    T_p = _round_up(T, t_chunk)

    # ---- fused + padded parameters (glue; in production cache at init) ----
    def pad2(a, r, c):
        return jnp.zeros((r, c), a.dtype).at[:a.shape[0], :a.shape[1]].set(a)

    w_i = jnp.zeros((Ep, 3 * Hp), f32)
    w_i = w_i.at[:E, 0:H].set(params["w_ir"])
    w_i = w_i.at[:E, Hp:Hp + H].set(params["w_iz"])
    w_i = w_i.at[:E, 2 * Hp:2 * Hp + H].set(params["w_in"])
    w_i = w_i.astype(bf16)

    b_i = jnp.zeros((1, 3 * Hp), f32)
    b_i = b_i.at[:, 0:H].set(params["b_r"])
    b_i = b_i.at[:, Hp:Hp + H].set(params["b_z"])
    b_i = b_i.at[:, 2 * Hp:2 * Hp + H].set(params["b_in"])

    w_h = jnp.zeros((Hp, 3 * Hp), f32)
    w_h = w_h.at[:H, 0:H].set(params["w_hr"])
    w_h = w_h.at[:H, Hp:Hp + H].set(params["w_hz"])
    w_h = w_h.at[:H, 2 * Hp:2 * Hp + H].set(params["w_hn"])
    w_h = w_h.astype(bf16)

    b_hn = pad2(params["b_hn"], 1, Hp)
    w_out = pad2(params["w_out"], Hp, Vp).astype(bf16)
    b_out = pad2(params["b_out"], 1, Vp)
    emb_p = pad2(emb, emb.shape[0], Ep).astype(bf16)

    # ---- embedding gather directly in time-major order (ids transpose is
    #      free; no bf16 activation relayout before the kernel) --------------
    ids_tm = jnp.zeros((T_p, Bp), jnp.int32).at[:T, :B].set(
        x_ids.astype(jnp.int32).T)
    x_tm = jnp.take(emb_p, ids_tm, axis=0)                  # (T_p, Bp, Ep) bf16

    lens = jnp.zeros((Bp, 1), jnp.int32).at[:B, 0].set(
        x_lens.astype(jnp.int32))

    # ---- 1) fused input projection + recurrence ----------------------------
    h_all = _gru_scan(x_tm, w_i, b_i, w_h, b_hn, lens,
                      bchunk=bchunk, t_chunk=t_chunk, cap=cap)
    # h_all: (T_p, Bp, Hp) bf16, already masked past each length

    # ---- 2) output Linear only over the T valid timesteps ------------------
    h_bt = jnp.transpose(h_all[:T, :B], (1, 0, 2))          # (B, T, Hp) bf16
    rows = B * T
    rows_p = _round_up(rows, 8)
    h_flat = jnp.zeros((rows_p, Hp), bf16).at[:rows].set(
        h_bt.reshape(rows, Hp))
    logits = _tiled_linear(h_flat, w_out, b_out, out_dtype=f32,
                           budget=budget, cap=cap)
    logits = logits[:rows, :V].reshape(B, T, V)

    # ---- 3) pad_packed_sequence(total_length=max_length, padding_value=0):
    #      padded rows through the Linear are exactly its bias. --------------
    out = jnp.broadcast_to(params["b_out"].reshape(1, 1, V),
                           (B, max_length, V))
    tt = min(T, max_length)
    out = out.at[:, :tt, :].set(logits[:, :tt, :])
    return out


# --------------------------------------------------------------------------
# Deterministic parameter construction (synthetic, matches module shapes)
# --------------------------------------------------------------------------
def init_params(key, embedding_dim, hidden_dim, output_dim, pad_token=0):
    vocab = output_dim + 1
    ks = jax.random.split(key, 12)
    s_ih = 1.0 / jnp.sqrt(hidden_dim)

    emb = jax.random.normal(ks[0], (vocab, embedding_dim), jnp.float32) * 0.1
    emb = emb.at[pad_token].set(0.0)  # padding_idx=pad_token

    def u(k, shape, scale):
        return jax.random.uniform(k, shape, jnp.float32, -scale, scale)

    return {
        "embedding": emb,
        # GRU per-gate weights, stored transposed: (E, H) and (H, H).
        "w_ir": u(ks[1], (embedding_dim, hidden_dim), s_ih),
        "w_iz": u(ks[2], (embedding_dim, hidden_dim), s_ih),
        "w_in": u(ks[3], (embedding_dim, hidden_dim), s_ih),
        "w_hr": u(ks[4], (hidden_dim, hidden_dim), s_ih),
        "w_hz": u(ks[5], (hidden_dim, hidden_dim), s_ih),
        "w_hn": u(ks[6], (hidden_dim, hidden_dim), s_ih),
        # b_r = b_ir + b_hr, b_z = b_iz + b_hz (mathematically identical);
        # b_in / b_hn kept separate (b_hn sits inside r * (...)).
        "b_r": u(ks[7], (1, hidden_dim), s_ih),
        "b_z": u(ks[8], (1, hidden_dim), s_ih),
        "b_in": u(ks[9], (1, hidden_dim), s_ih),
        "b_hn": u(ks[10], (1, hidden_dim), s_ih),
        # Output Linear(hidden_dim, output_dim + 1), stored transposed.
        "w_out": u(ks[11], (hidden_dim, vocab), 1.0 / jnp.sqrt(hidden_dim)),
        "b_out": jnp.zeros((1, vocab), jnp.float32),
    }


if __name__ == "__main__":
    B, T = 2, 8
    embedding_dim, hidden_dim, output_dim = 32, 32, 10
    max_length = 200  # hard-coded in the PyTorch module (self.max_length = 200)

    key = jax.random.PRNGKey(0)
    k_param, k_ids = jax.random.split(key)
    params = init_params(k_param, embedding_dim, hidden_dim, output_dim)

    # Token ids in [1, output_dim], explicit padding (id 0) past each length.
    x_lens = jnp.array([8, 5], dtype=jnp.int32)
    x_ids = jax.random.randint(k_ids, (B, T), 1, output_dim + 1,
                               dtype=jnp.int32)
    pos = jnp.arange(T)[None, :]
    x_ids = jnp.where(pos < x_lens[:, None], x_ids, 0)

    fwd = jax.jit(functools.partial(gru4rec_forward, max_length=max_length))
    out = fwd(params, x_ids, x_lens)
    out = jax.block_until_ready(out)

    assert out.shape == (B, max_length, output_dim + 1), out.shape
    assert out.dtype == jnp.float32
    print("KERNEL_OK")
</pallas_src>

<mosaic_0001>
module attributes {stable_mosaic.version = 11 : i64} {
  func.func @_gru_kernel(%arg0: i32, %arg1: i32, %arg2: memref<8x8x128xbf16, #tpu.memory_space<vmem>>, %arg3: memref<128x384xbf16, #tpu.memory_space<vmem>>, %arg4: memref<1x384xf32, #tpu.memory_space<vmem>>, %arg5: memref<128x384xbf16, #tpu.memory_space<vmem>>, %arg6: memref<1x128xf32, #tpu.memory_space<vmem>>, %arg7: memref<8x1xi32, #tpu.memory_space<vmem>>, %arg8: memref<8x8x128xbf16, #tpu.memory_space<vmem>>, %arg9: memref<8x128xf32, #tpu.memory_space<vmem>>) attributes {dimension_semantics = [#tpu.dimension_semantics<parallel>, #tpu.dimension_semantics<arbitrary>], iteration_bounds = array<i64: 1, 1>, scalar_prefetch = 0 : i64, scratch_operands = 1 : i64, tpu.core_type = #tpu.core_type<tc>, window_params = [{transform_indices = @transform_0, window_bounds = array<i64: 8, 8, 128>}, {pipeline_mode = #tpu.pipeline_mode<synchronous>, transform_indices = @transform_1, window_bounds = array<i64: 128, 384>}, {pipeline_mode = #tpu.pipeline_mode<synchronous>, transform_indices = @transform_2, window_bounds = array<i64: 1, 384>}, {pipeline_mode = #tpu.pipeline_mode<synchronous>, transform_indices = @transform_3, window_bounds = array<i64: 128, 384>}, {pipeline_mode = #tpu.pipeline_mode<synchronous>, transform_indices = @transform_4, window_bounds = array<i64: 1, 128>}, {transform_indices = @transform_5, window_bounds = array<i64: 8, 1>}, {transform_indices = @transform_6, window_bounds = array<i64: 8, 8, 128>}]} {
    %c0_i32 = arith.constant 0 : i32
    %0 = arith.cmpi eq, %arg1, %c0_i32 : i32
    %1 = arith.extui %0 : i1 to i32
    %c0_i32_0 = arith.constant 0 : i32
    %2 = arith.cmpi ne, %1, %c0_i32_0 : i32
    scf.if %2 {
      %cst_87 = arith.constant 0.000000e+00 : f32
      %395 = vector.broadcast %cst_87 : f32 to vector<8x128xf32>
      %c0_88 = arith.constant 0 : index
      %c0_89 = arith.constant 0 : index
      %396 = vector.load %arg9[%c0_88, %c0_89] : memref<8x128xf32, #tpu.memory_space<vmem>>, vector<8x128xf32>
      tpu.vector_store %arg9[%c0_88, %c0_89], %395 {strides = array<i32>} : memref<8x128xf32, #tpu.memory_space<vmem>>, vector<8x128xf32>,
    } else {
    }
    %c0 = arith.constant 0 : index
    %c0_1 = arith.constant 0 : index
    %3 = vector.load %arg3[%c0, %c0_1] : memref<128x384xbf16, #tpu.memory_space<vmem>>, vector<128x384xbf16>
    %c0_2 = arith.constant 0 : index
    %c0_3 = arith.constant 0 : index
    %4 = vector.load %arg5[%c0_2, %c0_3] : memref<128x384xbf16, #tpu.memory_space<vmem>>, vector<128x384xbf16>
    %c0_4 = arith.constant 0 : index
    %c0_5 = arith.constant 0 : index
    %5 = vector.load %arg4[%c0_4, %c0_5] : memref<1x384xf32, #tpu.memory_space<vmem>>, vector<1x384xf32>
    %c0_6 = arith.constant 0 : index
    %c0_7 = arith.constant 0 : index
    %6 = vector.load %arg6[%c0_6, %c0_7] : memref<1x128xf32, #tpu.memory_space<vmem>>, vector<1x128xf32>
    %c0_8 = arith.constant 0 : index
    %c0_9 = arith.constant 0 : index
    %7 = vector.load %arg7[%c0_8, %c0_9] : memref<8x1xi32, #tpu.memory_space<vmem>>, vector<8x1xi32>
    %c8_i32 = arith.constant 8 : i32
    %8 = arith.muli %arg1, %c8_i32 : i32
    %c0_10 = arith.constant 0 : index
    %c0_11 = arith.constant 0 : index
    %9 = vector.load %arg9[%c0_10, %c0_11] : memref<8x128xf32, #tpu.memory_space<vmem>>, vector<8x128xf32>
    %c0_i32_12 = arith.constant 0 : i32
    %10 = arith.index_cast %c0_i32_12 : i32 to index
    %c0_13 = arith.constant 0 : index
    %c0_14 = arith.constant 0 : index
    %11 = vector.load %arg2[%10, %c0_13, %c0_14] : memref<8x8x128xbf16, #tpu.memory_space<vmem>>, vector<1x8x128xbf16>
    %12 = vector.shape_cast %11 : vector<1x8x128xbf16> to vector<8x128xbf16>
    %cst = arith.constant dense<0.000000e+00> : vector<8x384xf32>
    %13 = tpu.matmul %12, %3, %cst {dimension_numbers = #tpu.dot_dimension_numbers<[1], [0], [0], [1], [0, 0, 1, 1], [], []>} : vector<8x128xbf16>, vector<128x384xbf16>, vector<8x384xf32> -> vector<8x384xf32>
    %14 = vector.broadcast %5 : vector<1x384xf32> to vector<8x384xf32>
    %15 = arith.addf %13, %14 : vector<8x384xf32>
    %16 = arith.truncf %9 : vector<8x128xf32> to vector<8x128xbf16>
    %cst_15 = arith.constant dense<0.000000e+00> : vector<8x384xf32>
    %17 = tpu.matmul %16, %4, %cst_15 {dimension_numbers = #tpu.dot_dimension_numbers<[1], [0], [0], [1], [0, 0, 1, 1], [], []>} : vector<8x128xbf16>, vector<128x384xbf16>, vector<8x384xf32> -> vector<8x384xf32>
    %18 = vector.extract_strided_slice %15 {offsets = [0, 0], sizes = [8, 128], strides = [1, 1]} : vector<8x384xf32> to vector<8x128xf32>
    %19 = vector.extract_strided_slice %17 {offsets = [0, 0], sizes = [8, 128], strides = [1, 1]} : vector<8x384xf32> to vector<8x128xf32>
    %20 = arith.addf %18, %19 : vector<8x128xf32>
    %21 = arith.negf %20 : vector<8x128xf32>
    %22 = math.exp %21 : vector<8x128xf32>
    %cst_16 = arith.constant 1.000000e+00 : f32
    %23 = vector.broadcast %cst_16 : f32 to vector<8x128xf32>
    %24 = arith.addf %23, %22 : vector<8x128xf32>
    %25 = arith.divf %23, %24 : vector<8x128xf32>
    %26 = vector.extract_strided_slice %15 {offsets = [0, 128], sizes = [8, 128], strides = [1, 1]} : vector<8x384xf32> to vector<8x128xf32>
    %27 = vector.extract_strided_slice %17 {offsets = [0, 128], sizes = [8, 128], strides = [1, 1]} : vector<8x384xf32> to vector<8x128xf32>
    %28 = arith.addf %26, %27 : vector<8x128xf32>
    %29 = arith.negf %28 : vector<8x128xf32>
    %30 = math.exp %29 : vector<8x128xf32>
    %cst_17 = arith.constant 1.000000e+00 : f32
    %31 = vector.broadcast %cst_17 : f32 to vector<8x128xf32>
    %32 = arith.addf %31, %30 : vector<8x128xf32>
    %33 = arith.divf %31, %32 : vector<8x128xf32>
    %34 = vector.extract_strided_slice %15 {offsets = [0, 256], sizes = [8, 128], strides = [1, 1]} : vector<8x384xf32> to vector<8x128xf32>
    %35 = vector.extract_strided_slice %17 {offsets = [0, 256], sizes = [8, 128], strides = [1, 1]} : vector<8x384xf32> to vector<8x128xf32>
    %36 = vector.broadcast %6 : vector<1x128xf32> to vector<8x128xf32>
    %37 = arith.addf %35, %36 : vector<8x128xf32>
    %38 = arith.mulf %25, %37 : vector<8x128xf32>
    %39 = arith.addf %34, %38 : vector<8x128xf32>
    %40 = math.tanh %39 : vector<8x128xf32>
    %cst_18 = arith.constant 1.000000e+00 : f32
    %41 = vector.broadcast %cst_18 : f32 to vector<8x128xf32>
    %42 = arith.subf %41, %33 : vector<8x128xf32>
    %43 = arith.mulf %42, %40 : vector<8x128xf32>
    %44 = arith.mulf %33, %9 : vector<8x128xf32>
    %45 = arith.addf %43, %44 : vector<8x128xf32>
    %46 = arith.addi %8, %c0_i32_12 : i32
    %47 = vector.broadcast %46 : i32 to vector<8x1xi32>
    %48 = arith.cmpi slt, %47, %7 : vector<8x1xi32>
    %49 = arith.extui %48 : vector<8x1xi1> to vector<8x1xi32>
    %50 = arith.sitofp %49 : vector<8x1xi32> to vector<8x1xf32>
    %51 = vector.broadcast %50 : vector<8x1xf32> to vector<8x128xf32>
    %52 = arith.mulf %45, %51 : vector<8x128xf32>
    %53 = arith.truncf %52 : vector<8x128xf32> to vector<8x128xbf16>
    %54 = arith.index_cast %c0_i32_12 : i32 to index
    %c0_19 = arith.constant 0 : index
    %c0_20 = arith.constant 0 : index
    %55 = vector.load %arg8[%54, %c0_19, %c0_20] : memref<8x8x128xbf16, #tpu.memory_space<vmem>>, vector<1x8x128xbf16>
    %56 = vector.shape_cast %55 : vector<1x8x128xbf16> to vector<8x128xbf16>
    %57 = vector.shape_cast %53 : vector<8x128xbf16> to vector<1x8x128xbf16>
    tpu.vector_store %arg8[%54, %c0_19, %c0_20], %57 {strides = array<i32>} : memref<8x8x128xbf16, #tpu.memory_space<vmem>>, vector<1x8x128xbf16>,
    %c1_i32 = arith.constant 1 : i32
    %58 = arith.index_cast %c1_i32 : i32 to index
    %c0_21 = arith.constant 0 : index
    %c0_22 = arith.constant 0 : index
    %59 = vector.load %arg2[%58, %c0_21, %c0_22] : memref<8x8x128xbf16, #tpu.memory_space<vmem>>, vector<1x8x128xbf16>
    %60 = vector.shape_cast %59 : vector<1x8x128xbf16> to vector<8x128xbf16>
    %cst_23 = arith.constant dense<0.000000e+00> : vector<8x384xf32>
    %61 = tpu.matmul %60, %3, %cst_23 {dimension_numbers = #tpu.dot_dimension_numbers<[1], [0], [0], [1], [0, 0, 1, 1], [], []>} : vector<8x128xbf16>, vector<128x384xbf16>, vector<8x384xf32> -> vector<8x384xf32>
    %62 = vector.broadcast %5 : vector<1x384xf32> to vector<8x384xf32>
    %63 = arith.addf %61, %62 : vector<8x384xf32>
    %64 = arith.truncf %45 : vector<8x128xf32> to vector<8x128xbf16>
    %cst_24 = arith.constant dense<0.000000e+00> : vector<8x384xf32>
    %65 = tpu.matmul %64, %4, %cst_24 {dimension_numbers = #tpu.dot_dimension_numbers<[1], [0], [0], [1], [0, 0, 1, 1], [], []>} : vector<8x128xbf16>, vector<128x384xbf16>, vector<8x384xf32> -> vector<8x384xf32>
    %66 = vector.extract_strided_slice %63 {offsets = [0, 0], sizes = [8, 128], strides = [1, 1]} : vector<8x384xf32> to vector<8x128xf32>
    %67 = vector.extract_strided_slice %65 {offsets = [0, 0], sizes = [8, 128], strides = [1, 1]} : vector<8x384xf32> to vector<8x128xf32>
    %68 = arith.addf %66, %67 : vector<8x128xf32>
    %69 = arith.negf %68 : vector<8x128xf32>
    %70 = math.exp %69 : vector<8x128xf32>
    %cst_25 = arith.constant 1.000000e+00 : f32
    %71 = vector.broadcast %cst_25 : f32 to vector<8x128xf32>
    %72 = arith.addf %71, %70 : vector<8x128xf32>
    %73 = arith.divf %71, %72 : vector<8x128xf32>
    %74 = vector.extract_strided_slice %63 {offsets = [0, 128], sizes = [8, 128], strides = [1, 1]} : vector<8x384xf32> to vector<8x128xf32>
    %75 = vector.extract_strided_slice %65 {offsets = [0, 128], sizes = [8, 128], strides = [1, 1]} : vector<8x384xf32> to vector<8x128xf32>
    %76 = arith.addf %74, %75 : vector<8x128xf32>
    %77 = arith.negf %76 : vector<8x128xf32>
    %78 = math.exp %77 : vector<8x128xf32>
    %cst_26 = arith.constant 1.000000e+00 : f32
    %79 = vector.broadcast %cst_26 : f32 to vector<8x128xf32>
    %80 = arith.addf %79, %78 : vector<8x128xf32>
    %81 = arith.divf %79, %80 : vector<8x128xf32>
    %82 = vector.extract_strided_slice %63 {offsets = [0, 256], sizes = [8, 128], strides = [1, 1]} : vector<8x384xf32> to vector<8x128xf32>
    %83 = vector.extract_strided_slice %65 {offsets = [0, 256], sizes = [8, 128], strides = [1, 1]} : vector<8x384xf32> to vector<8x128xf32>
    %84 = vector.broadcast %6 : vector<1x128xf32> to vector<8x128xf32>
    %85 = arith.addf %83, %84 : vector<8x128xf32>
    %86 = arith.mulf %73, %85 : vector<8x128xf32>
    %87 = arith.addf %82, %86 : vector<8x128xf32>
    %88 = math.tanh %87 : vector<8x128xf32>
    %cst_27 = arith.constant 1.000000e+00 : f32
    %89 = vector.broadcast %cst_27 : f32 to vector<8x128xf32>
    %90 = arith.subf %89, %81 : vector<8x128xf32>
    %91 = arith.mulf %90, %88 : vector<8x128xf32>
    %92 = arith.mulf %81, %45 : vector<8x128xf32>
    %93 = arith.addf %91, %92 : vector<8x128xf32>
    %94 = arith.addi %8, %c1_i32 : i32
    %95 = vector.broadcast %94 : i32 to vector<8x1xi32>
    %96 = arith.cmpi slt, %95, %7 : vector<8x1xi32>
    %97 = arith.extui %96 : vector<8x1xi1> to vector<8x1xi32>
    %98 = arith.sitofp %97 : vector<8x1xi32> to vector<8x1xf32>
    %99 = vector.broadcast %98 : vector<8x1xf32> to vector<8x128xf32>
    %100 = arith.mulf %93, %99 : vector<8x128xf32>
    %101 = arith.truncf %100 : vector<8x128xf32> to vector<8x128xbf16>
    %102 = arith.index_cast %c1_i32 : i32 to index
    %c0_28 = arith.constant 0 : index
    %c0_29 = arith.constant 0 : index
    %103 = vector.load %arg8[%102, %c0_28, %c0_29] : memref<8x8x128xbf16, #tpu.memory_space<vmem>>, vector<1x8x128xbf16>
    %104 = vector.shape_cast %103 : vector<1x8x128xbf16> to vector<8x128xbf16>
    %105 = vector.shape_cast %101 : vector<8x128xbf16> to vector<1x8x128xbf16>
    tpu.vector_store %arg8[%102, %c0_28, %c0_29], %105 {strides = array<i32>} : memref<8x8x128xbf16, #tpu.memory_space<vmem>>, vector<1x8x128xbf16>,
    %c2_i32 = arith.constant 2 : i32
    %106 = arith.index_cast %c2_i32 : i32 to index
    %c0_30 = arith.constant 0 : index
    %c0_31 = arith.constant 0 : index
    %107 = vector.load %arg2[%106, %c0_30, %c0_31] : memref<8x8x128xbf16, #tpu.memory_space<vmem>>, vector<1x8x128xbf16>
    %108 = vector.shape_cast %107 : vector<1x8x128xbf16> to vector<8x128xbf16>
    %cst_32 = arith.constant dense<0.000000e+00> : vector<8x384xf32>
    %109 = tpu.matmul %108, %3, %cst_32 {dimension_numbers = #tpu.dot_dimension_numbers<[1], [0], [0], [1], [0, 0, 1, 1], [], []>} : vector<8x128xbf16>, vector<128x384xbf16>, vector<8x384xf32> -> vector<8x384xf32>
    %110 = vector.broadcast %5 : vector<1x384xf32> to vector<8x384xf32>
    %111 = arith.addf %109, %110 : vector<8x384xf32>
    %112 = arith.truncf %93 : vector<8x128xf32> to vector<8x128xbf16>
    %cst_33 = arith.constant dense<0.000000e+00> : vector<8x384xf32>
    %113 = tpu.matmul %112, %4, %cst_33 {dimension_numbers = #tpu.dot_dimension_numbers<[1], [0], [0], [1], [0, 0, 1, 1], [], []>} : vector<8x128xbf16>, vector<128x384xbf16>, vector<8x384xf32> -> vector<8x384xf32>
    %114 = vector.extract_strided_slice %111 {offsets = [0, 0], sizes = [8, 128], strides = [1, 1]} : vector<8x384xf32> to vector<8x128xf32>
    %115 = vector.extract_strided_slice %113 {offsets = [0, 0], sizes = [8, 128], strides = [1, 1]} : vector<8x384xf32> to vector<8x128xf32>
    %116 = arith.addf %114, %115 : vector<8x128xf32>
    %117 = arith.negf %116 : vector<8x128xf32>
    %118 = math.exp %117 : vector<8x128xf32>
    %cst_34 = arith.constant 1.000000e+00 : f32
    %119 = vector.broadcast %cst_34 : f32 to vector<8x128xf32>
    %120 = arith.addf %119, %118 : vector<8x128xf32>
    %121 = arith.divf %119, %120 : vector<8x128xf32>
    %122 = vector.extract_strided_slice %111 {offsets = [0, 128], sizes = [8, 128], strides = [1, 1]} : vector<8x384xf32> to vector<8x128xf32>
    %123 = vector.extract_strided_slice %113 {offsets = [0, 128], sizes = [8, 128], strides = [1, 1]} : vector<8x384xf32> to vector<8x128xf32>
    %124 = arith.addf %122, %123 : vector<8x128xf32>
    %125 = arith.negf %124 : vector<8x128xf32>
    %126 = math.exp %125 : vector<8x128xf32>
    %cst_35 = arith.constant 1.000000e+00 : f32
    %127 = vector.broadcast %cst_35 : f32 to vector<8x128xf32>
    %128 = arith.addf %127, %126 : vector<8x128xf32>
    %129 = arith.divf %127, %128 : vector<8x128xf32>
    %130 = vector.extract_strided_slice %111 {offsets = [0, 256], sizes = [8, 128], strides = [1, 1]} : vector<8x384xf32> to vector<8x128xf32>
    %131 = vector.extract_strided_slice %113 {offsets = [0, 256], sizes = [8, 128], strides = [1, 1]} : vector<8x384xf32> to vector<8x128xf32>
    %132 = vector.broadcast %6 : vector<1x128xf32> to vector<8x128xf32>
    %133 = arith.addf %131, %132 : vector<8x128xf32>
    %134 = arith.mulf %121, %133 : vector<8x128xf32>
    %135 = arith.addf %130, %134 : vector<8x128xf32>
    %136 = math.tanh %135 : vector<8x128xf32>
    %cst_36 = arith.constant 1.000000e+00 : f32
    %137 = vector.broadcast %cst_36 : f32 to vector<8x128xf32>
    %138 = arith.subf %137, %129 : vector<8x128xf32>
    %139 = arith.mulf %138, %136 : vector<8x128xf32>
    %140 = arith.mulf %129, %93 : vector<8x128xf32>
    %141 = arith.addf %139, %140 : vector<8x128xf32>
    %142 = arith.addi %8, %c2_i32 : i32
    %143 = vector.broadcast %142 : i32 to vector<8x1xi32>
    %144 = arith.cmpi slt, %143, %7 : vector<8x1xi32>
    %145 = arith.extui %144 : vector<8x1xi1> to vector<8x1xi32>
    %146 = arith.sitofp %145 : vector<8x1xi32> to vector<8x1xf32>
    %147 = vector.broadcast %146 : vector<8x1xf32> to vector<8x128xf32>
    %148 = arith.mulf %141, %147 : vector<8x128xf32>
    %149 = arith.truncf %148 : vector<8x128xf32> to vector<8x128xbf16>
    %150 = arith.index_cast %c2_i32 : i32 to index
    %c0_37 = arith.constant 0 : index
    %c0_38 = arith.constant 0 : index
    %151 = vector.load %arg8[%150, %c0_37, %c0_38] : memref<8x8x128xbf16, #tpu.memory_space<vmem>>, vector<1x8x128xbf16>
    %152 = vector.shape_cast %151 : vector<1x8x128xbf16> to vector<8x128xbf16>
    %153 = vector.shape_cast %149 : vector<8x128xbf16> to vector<1x8x128xbf16>
    tpu.vector_store %arg8[%150, %c0_37, %c0_38], %153 {strides = array<i32>} : memref<8x8x128xbf16, #tpu.memory_space<vmem>>, vector<1x8x128xbf16>,
    %c3_i32 = arith.constant 3 : i32
    %154 = arith.index_cast %c3_i32 : i32 to index
    %c0_39 = arith.constant 0 : index
    %c0_40 = arith.constant 0 : index
    %155 = vector.load %arg2[%154, %c0_39, %c0_40] : memref<8x8x128xbf16, #tpu.memory_space<vmem>>, vector<1x8x128xbf16>
    %156 = vector.shape_cast %155 : vector<1x8x128xbf16> to vector<8x128xbf16>
    %cst_41 = arith.constant dense<0.000000e+00> : vector<8x384xf32>
    %157 = tpu.matmul %156, %3, %cst_41 {dimension_numbers = #tpu.dot_dimension_numbers<[1], [0], [0], [1], [0, 0, 1, 1], [], []>} : vector<8x128xbf16>, vector<128x384xbf16>, vector<8x384xf32> -> vector<8x384xf32>
    %158 = vector.broadcast %5 : vector<1x384xf32> to vector<8x384xf32>
    %159 = arith.addf %157, %158 : vector<8x384xf32>
    %160 = arith.truncf %141 : vector<8x128xf32> to vector<8x128xbf16>
    %cst_42 = arith.constant dense<0.000000e+00> : vector<8x384xf32>
    %161 = tpu.matmul %160, %4, %cst_42 {dimension_numbers = #tpu.dot_dimension_numbers<[1], [0], [0], [1], [0, 0, 1, 1], [], []>} : vector<8x128xbf16>, vector<128x384xbf16>, vector<8x384xf32> -> vector<8x384xf32>
    %162 = vector.extract_strided_slice %159 {offsets = [0, 0], sizes = [8, 128], strides = [1, 1]} : vector<8x384xf32> to vector<8x128xf32>
    %163 = vector.extract_strided_slice %161 {offsets = [0, 0], sizes = [8, 128], strides = [1, 1]} : vector<8x384xf32> to vector<8x128xf32>
    %164 = arith.addf %162, %163 : vector<8x128xf32>
    %165 = arith.negf %164 : vector<8x128xf32>
    %166 = math.exp %165 : vector<8x128xf32>
    %cst_43 = arith.constant 1.000000e+00 : f32
    %167 = vector.broadcast %cst_43 : f32 to vector<8x128xf32>
    %168 = arith.addf %167, %166 : vector<8x128xf32>
    %169 = arith.divf %167, %168 : vector<8x128xf32>
    %170 = vector.extract_strided_slice %159 {offsets = [0, 128], sizes = [8, 128], strides = [1, 1]} : vector<8x384xf32> to vector<8x128xf32>
    %171 = vector.extract_strided_slice %161 {offsets = [0, 128], sizes = [8, 128], strides = [1, 1]} : vector<8x384xf32> to vector<8x128xf32>
    %172 = arith.addf %170, %171 : vector<8x128xf32>
    %173 = arith.negf %172 : vector<8x128xf32>
    %174 = math.exp %173 : vector<8x128xf32>
    %cst_44 = arith.constant 1.000000e+00 : f32
    %175 = vector.broadcast %cst_44 : f32 to vector<8x128xf32>
    %176 = arith.addf %175, %174 : vector<8x128xf32>
    %177 = arith.divf %175, %176 : vector<8x128xf32>
    %178 = vector.extract_strided_slice %159 {offsets = [0, 256], sizes = [8, 128], strides = [1, 1]} : vector<8x384xf32> to vector<8x128xf32>
    %179 = vector.extract_strided_slice %161 {offsets = [0, 256], sizes = [8, 128], strides = [1, 1]} : vector<8x384xf32> to vector<8x128xf32>
    %180 = vector.broadcast %6 : vector<1x128xf32> to vector<8x128xf32>
    %181 = arith.addf %179, %180 : vector<8x128xf32>
    %182 = arith.mulf %169, %181 : vector<8x128xf32>
    %183 = arith.addf %178, %182 : vector<8x128xf32>
    %184 = math.tanh %183 : vector<8x128xf32>
    %cst_45 = arith.constant 1.000000e+00 : f32
    %185 = vector.broadcast %cst_45 : f32 to vector<8x128xf32>
    %186 = arith.subf %185, %177 : vector<8x128xf32>
    %187 = arith.mulf %186, %184 : vector<8x128xf32>
    %188 = arith.mulf %177, %141 : vector<8x128xf32>
    %189 = arith.addf %187, %188 : vector<8x128xf32>
    %190 = arith.addi %8, %c3_i32 : i32
    %191 = vector.broadcast %190 : i32 to vector<8x1xi32>
    %192 = arith.cmpi slt, %191, %7 : vector<8x1xi32>
    %193 = arith.extui %192 : vector<8x1xi1> to vector<8x1xi32>
    %194 = arith.sitofp %193 : vector<8x1xi32> to vector<8x1xf32>
    %195 = vector.broadcast %194 : vector<8x1xf32> to vector<8x128xf32>
    %196 = arith.mulf %189, %195 : vector<8x128xf32>
    %197 = arith.truncf %196 : vector<8x128xf32> to vector<8x128xbf16>
    %198 = arith.index_cast %c3_i32 : i32 to index
    %c0_46 = arith.constant 0 : index
    %c0_47 = arith.constant 0 : index
    %199 = vector.load %arg8[%198, %c0_46, %c0_47] : memref<8x8x128xbf16, #tpu.memory_space<vmem>>, vector<1x8x128xbf16>
    %200 = vector.shape_cast %199 : vector<1x8x128xbf16> to vector<8x128xbf16>
    %201 = vector.shape_cast %197 : vector<8x128xbf16> to vector<1x8x128xbf16>
    tpu.vector_store %arg8[%198, %c0_46, %c0_47], %201 {strides = array<i32>} : memref<8x8x128xbf16, #tpu.memory_space<vmem>>, vector<1x8x128xbf16>,
    %c4_i32 = arith.constant 4 : i32
    %202 = arith.index_cast %c4_i32 : i32 to index
    %c0_48 = arith.constant 0 : index
    %c0_49 = arith.constant 0 : index
    %203 = vector.load %arg2[%202, %c0_48, %c0_49] : memref<8x8x128xbf16, #tpu.memory_space<vmem>>, vector<1x8x128xbf16>
    %204 = vector.shape_cast %203 : vector<1x8x128xbf16> to vector<8x128xbf16>
    %cst_50 = arith.constant dense<0.000000e+00> : vector<8x384xf32>
    %205 = tpu.matmul %204, %3, %cst_50 {dimension_numbers = #tpu.dot_dimension_numbers<[1], [0], [0], [1], [0, 0, 1, 1], [], []>} : vector<8x128xbf16>, vector<128x384xbf16>, vector<8x384xf32> -> vector<8x384xf32>
    %206 = vector.broadcast %5 : vector<1x384xf32> to vector<8x384xf32>
    %207 = arith.addf %205, %206 : vector<8x384xf32>
    %208 = arith.truncf %189 : vector<8x128xf32> to vector<8x128xbf16>
    %cst_51 = arith.constant dense<0.000000e+00> : vector<8x384xf32>
    %209 = tpu.matmul %208, %4, %cst_51 {dimension_numbers = #tpu.dot_dimension_numbers<[1], [0], [0], [1], [0, 0, 1, 1], [], []>} : vector<8x128xbf16>, vector<128x384xbf16>, vector<8x384xf32> -> vector<8x384xf32>
    %210 = vector.extract_strided_slice %207 {offsets = [0, 0], sizes = [8, 128], strides = [1, 1]} : vector<8x384xf32> to vector<8x128xf32>
    %211 = vector.extract_strided_slice %209 {offsets = [0, 0], sizes = [8, 128], strides = [1, 1]} : vector<8x384xf32> to vector<8x128xf32>
    %212 = arith.addf %210, %211 : vector<8x128xf32>
    %213 = arith.negf %212 : vector<8x128xf32>
    %214 = math.exp %213 : vector<8x128xf32>
    %cst_52 = arith.constant 1.000000e+00 : f32
    %215 = vector.broadcast %cst_52 : f32 to vector<8x128xf32>
    %216 = arith.addf %215, %214 : vector<8x128xf32>
    %217 = arith.divf %215, %216 : vector<8x128xf32>
    %218 = vector.extract_strided_slice %207 {offsets = [0, 128], sizes = [8, 128], strides = [1, 1]} : vector<8x384xf32> to vector<8x128xf32>
    %219 = vector.extract_strided_slice %209 {offsets = [0, 128], sizes = [8, 128], strides = [1, 1]} : vector<8x384xf32> to vector<8x128xf32>
    %220 = arith.addf %218, %219 : vector<8x128xf32>
    %221 = arith.negf %220 : vector<8x128xf32>
    %222 = math.exp %221 : vector<8x128xf32>
    %cst_53 = arith.constant 1.000000e+00 : f32
    %223 = vector.broadcast %cst_53 : f32 to vector<8x128xf32>
    %224 = arith.addf %223, %222 : vector<8x128xf32>
    %225 = arith.divf %223, %224 : vector<8x128xf32>
    %226 = vector.extract_strided_slice %207 {offsets = [0, 256], sizes = [8, 128], strides = [1, 1]} : vector<8x384xf32> to vector<8x128xf32>
    %227 = vector.extract_strided_slice %209 {offsets = [0, 256], sizes = [8, 128], strides = [1, 1]} : vector<8x384xf32> to vector<8x128xf32>
    %228 = vector.broadcast %6 : vector<1x128xf32> to vector<8x128xf32>
    %229 = arith.addf %227, %228 : vector<8x128xf32>
    %230 = arith.mulf %217, %229 : vector<8x128xf32>
    %231 = arith.addf %226, %230 : vector<8x128xf32>
    %232 = math.tanh %231 : vector<8x128xf32>
    %cst_54 = arith.constant 1.000000e+00 : f32
    %233 = vector.broadcast %cst_54 : f32 to vector<8x128xf32>
    %234 = arith.subf %233, %225 : vector<8x128xf32>
    %235 = arith.mulf %234, %232 : vector<8x128xf32>
    %236 = arith.mulf %225, %189 : vector<8x128xf32>
    %237 = arith.addf %235, %236 : vector<8x128xf32>
    %238 = arith.addi %8, %c4_i32 : i32
    %239 = vector.broadcast %238 : i32 to vector<8x1xi32>
    %240 = arith.cmpi slt, %239, %7 : vector<8x1xi32>
    %241 = arith.extui %240 : vector<8x1xi1> to vector<8x1xi32>
    %242 = arith.sitofp %241 : vector<8x1xi32> to vector<8x1xf32>
    %243 = vector.broadcast %242 : vector<8x1xf32> to vector<8x128xf32>
    %244 = arith.mulf %237, %243 : vector<8x128xf32>
    %245 = arith.truncf %244 : vector<8x128xf32> to vector<8x128xbf16>
    %246 = arith.index_cast %c4_i32 : i32 to index
    %c0_55 = arith.constant 0 : index
    %c0_56 = arith.constant 0 : index
    %247 = vector.load %arg8[%246, %c0_55, %c0_56] : memref<8x8x128xbf16, #tpu.memory_space<vmem>>, vector<1x8x128xbf16>
    %248 = vector.shape_cast %247 : vector<1x8x128xbf16> to vector<8x128xbf16>
    %249 = vector.shape_cast %245 : vector<8x128xbf16> to vector<1x8x128xbf16>
    tpu.vector_store %arg8[%246, %c0_55, %c0_56], %249 {strides = array<i32>} : memref<8x8x128xbf16, #tpu.memory_space<vmem>>, vector<1x8x128xbf16>,
    %c5_i32 = arith.constant 5 : i32
    %250 = arith.index_cast %c5_i32 : i32 to index
    %c0_57 = arith.constant 0 : index
    %c0_58 = arith.constant 0 : index
    %251 = vector.load %arg2[%250, %c0_57, %c0_58] : memref<8x8x128xbf16, #tpu.memory_space<vmem>>, vector<1x8x128xbf16>
    %252 = vector.shape_cast %251 : vector<1x8x128xbf16> to vector<8x128xbf16>
    %cst_59 = arith.constant dense<0.000000e+00> : vector<8x384xf32>
    %253 = tpu.matmul %252, %3, %cst_59 {dimension_numbers = #tpu.dot_dimension_numbers<[1], [0], [0], [1], [0, 0, 1, 1], [], []>} : vector<8x128xbf16>, vector<128x384xbf16>, vector<8x384xf32> -> vector<8x384xf32>
    %254 = vector.broadcast %5 : vector<1x384xf32> to vector<8x384xf32>
    %255 = arith.addf %253, %254 : vector<8x384xf32>
    %256 = arith.truncf %237 : vector<8x128xf32> to vector<8x128xbf16>
    %cst_60 = arith.constant dense<0.000000e+00> : vector<8x384xf32>
    %257 = tpu.matmul %256, %4, %cst_60 {dimension_numbers = #tpu.dot_dimension_numbers<[1], [0], [0], [1], [0, 0, 1, 1], [], []>} : vector<8x128xbf16>, vector<128x384xbf16>, vector<8x384xf32> -> vector<8x384xf32>
    %258 = vector.extract_strided_slice %255 {offsets = [0, 0], sizes = [8, 128], strides = [1, 1]} : vector<8x384xf32> to vector<8x128xf32>
    %259 = vector.extract_strided_slice %257 {offsets = [0, 0], sizes = [8, 128], strides = [1, 1]} : vector<8x384xf32> to vector<8x128xf32>
    %260 = arith.addf %258, %259 : vector<8x128xf32>
    %261 = arith.negf %260 : vector<8x128xf32>
    %262 = math.exp %261 : vector<8x128xf32>
    %cst_61 = arith.constant 1.000000e+00 : f32
    %263 = vector.broadcast %cst_61 : f32 to vector<8x128xf32>
    %264 = arith.addf %263, %262 : vector<8x128xf32>
    %265 = arith.divf %263, %264 : vector<8x128xf32>
    %266 = vector.extract_strided_slice %255 {offsets = [0, 128], sizes = [8, 128], strides = [1, 1]} : vector<8x384xf32> to vector<8x128xf32>
    %267 = vector.extract_strided_slice %257 {offsets = [0, 128], sizes = [8, 128], strides = [1, 1]} : vector<8x384xf32> to vector<8x128xf32>
    %268 = arith.addf %266, %267 : vector<8x128xf32>
    %269 = arith.negf %268 : vector<8x128xf32>
    %270 = math.exp %269 : vector<8x128xf32>
    %cst_62 = arith.constant 1.000000e+00 : f32
    %271 = vector.broadcast %cst_62 : f32 to vector<8x128xf32>
    %272 = arith.addf %271, %270 : vector<8x128xf32>
    %273 = arith.divf %271, %272 : vector<8x128xf32>
    %274 = vector.extract_strided_slice %255 {offsets = [0, 256], sizes = [8, 128], strides = [1, 1]} : vector<8x384xf32> to vector<8x128xf32>
    %275 = vector.extract_strided_slice %257 {offsets = [0, 256], sizes = [8, 128], strides = [1, 1]} : vector<8x384xf32> to vector<8x128xf32>
    %276 = vector.broadcast %6 : vector<1x128xf32> to vector<8x128xf32>
    %277 = arith.addf %275, %276 : vector<8x128xf32>
    %278 = arith.mulf %265, %277 : vector<8x128xf32>
    %279 = arith.addf %274, %278 : vector<8x128xf32>
    %280 = math.tanh %279 : vector<8x128xf32>
    %cst_63 = arith.constant 1.000000e+00 : f32
    %281 = vector.broadcast %cst_63 : f32 to vector<8x128xf32>
    %282 = arith.subf %281, %273 : vector<8x128xf32>
    %283 = arith.mulf %282, %280 : vector<8x128xf32>
    %284 = arith.mulf %273, %237 : vector<8x128xf32>
    %285 = arith.addf %283, %284 : vector<8x128xf32>
    %286 = arith.addi %8, %c5_i32 : i32
    %287 = vector.broadcast %286 : i32 to vector<8x1xi32>
    %288 = arith.cmpi slt, %287, %7 : vector<8x1xi32>
    %289 = arith.extui %288 : vector<8x1xi1> to vector<8x1xi32>
    %290 = arith.sitofp %289 : vector<8x1xi32> to vector<8x1xf32>
    %291 = vector.broadcast %290 : vector<8x1xf32> to vector<8x128xf32>
    %292 = arith.mulf %285, %291 : vector<8x128xf32>
    %293 = arith.truncf %292 : vector<8x128xf32> to vector<8x128xbf16>
    %294 = arith.index_cast %c5_i32 : i32 to index
    %c0_64 = arith.constant 0 : index
    %c0_65 = arith.constant 0 : index
    %295 = vector.load %arg8[%294, %c0_64, %c0_65] : memref<8x8x128xbf16, #tpu.memory_space<vmem>>, vector<1x8x128xbf16>
    %296 = vector.shape_cast %295 : vector<1x8x128xbf16> to vector<8x128xbf16>
    %297 = vector.shape_cast %293 : vector<8x128xbf16> to vector<1x8x128xbf16>
    tpu.vector_store %arg8[%294, %c0_64, %c0_65], %297 {strides = array<i32>} : memref<8x8x128xbf16, #tpu.memory_space<vmem>>, vector<1x8x128xbf16>,
    %c6_i32 = arith.constant 6 : i32
    %298 = arith.index_cast %c6_i32 : i32 to index
    %c0_66 = arith.constant 0 : index
    %c0_67 = arith.constant 0 : index
    %299 = vector.load %arg2[%298, %c0_66, %c0_67] : memref<8x8x128xbf16, #tpu.memory_space<vmem>>, vector<1x8x128xbf16>
    %300 = vector.shape_cast %299 : vector<1x8x128xbf16> to vector<8x128xbf16>
    %cst_68 = arith.constant dense<0.000000e+00> : vector<8x384xf32>
    %301 = tpu.matmul %300, %3, %cst_68 {dimension_numbers = #tpu.dot_dimension_numbers<[1], [0], [0], [1], [0, 0, 1, 1], [], []>} : vector<8x128xbf16>, vector<128x384xbf16>, vector<8x384xf32> -> vector<8x384xf32>
    %302 = vector.broadcast %5 : vector<1x384xf32> to vector<8x384xf32>
    %303 = arith.addf %301, %302 : vector<8x384xf32>
    %304 = arith.truncf %285 : vector<8x128xf32> to vector<8x128xbf16>
    %cst_69 = arith.constant dense<0.000000e+00> : vector<8x384xf32>
    %305 = tpu.matmul %304, %4, %cst_69 {dimension_numbers = #tpu.dot_dimension_numbers<[1], [0], [0], [1], [0, 0, 1, 1], [], []>} : vector<8x128xbf16>, vector<128x384xbf16>, vector<8x384xf32> -> vector<8x384xf32>
    %306 = vector.extract_strided_slice %303 {offsets = [0, 0], sizes = [8, 128], strides = [1, 1]} : vector<8x384xf32> to vector<8x128xf32>
    %307 = vector.extract_strided_slice %305 {offsets = [0, 0], sizes = [8, 128], strides = [1, 1]} : vector<8x384xf32> to vector<8x128xf32>
    %308 = arith.addf %306, %307 : vector<8x128xf32>
    %309 = arith.negf %308 : vector<8x128xf32>
    %310 = math.exp %309 : vector<8x128xf32>
    %cst_70 = arith.constant 1.000000e+00 : f32
    %311 = vector.broadcast %cst_70 : f32 to vector<8x128xf32>
    %312 = arith.addf %311, %310 : vector<8x128xf32>
    %313 = arith.divf %311, %312 : vector<8x128xf32>
    %314 = vector.extract_strided_slice %303 {offsets = [0, 128], sizes = [8, 128], strides = [1, 1]} : vector<8x384xf32> to vector<8x128xf32>
    %315 = vector.extract_strided_slice %305 {offsets = [0, 128], sizes = [8, 128], strides = [1, 1]} : vector<8x384xf32> to vector<8x128xf32>
    %316 = arith.addf %314, %315 : vector<8x128xf32>
    %317 = arith.negf %316 : vector<8x128xf32>
    %318 = math.exp %317 : vector<8x128xf32>
    %cst_71 = arith.constant 1.000000e+00 : f32
    %319 = vector.broadcast %cst_71 : f32 to vector<8x128xf32>
    %320 = arith.addf %319, %318 : vector<8x128xf32>
    %321 = arith.divf %319, %320 : vector<8x128xf32>
    %322 = vector.extract_strided_slice %303 {offsets = [0, 256], sizes = [8, 128], strides = [1, 1]} : vector<8x384xf32> to vector<8x128xf32>
    %323 = vector.extract_strided_slice %305 {offsets = [0, 256], sizes = [8, 128], strides = [1, 1]} : vector<8x384xf32> to vector<8x128xf32>
    %324 = vector.broadcast %6 : vector<1x128xf32> to vector<8x128xf32>
    %325 = arith.addf %323, %324 : vector<8x128xf32>
    %326 = arith.mulf %313, %325 : vector<8x128xf32>
    %327 = arith.addf %322, %326 : vector<8x128xf32>
    %328 = math.tanh %327 : vector<8x128xf32>
    %cst_72 = arith.constant 1.000000e+00 : f32
    %329 = vector.broadcast %cst_72 : f32 to vector<8x128xf32>
    %330 = arith.subf %329, %321 : vector<8x128xf32>
    %331 = arith.mulf %330, %328 : vector<8x128xf32>
    %332 = arith.mulf %321, %285 : vector<8x128xf32>
    %333 = arith.addf %331, %332 : vector<8x128xf32>
    %334 = arith.addi %8, %c6_i32 : i32
    %335 = vector.broadcast %334 : i32 to vector<8x1xi32>
    %336 = arith.cmpi slt, %335, %7 : vector<8x1xi32>
    %337 = arith.extui %336 : vector<8x1xi1> to vector<8x1xi32>
    %338 = arith.sitofp %337 : vector<8x1xi32> to vector<8x1xf32>
    %339 = vector.broadcast %338 : vector<8x1xf32> to vector<8x128xf32>
    %340 = arith.mulf %333, %339 : vector<8x128xf32>
    %341 = arith.truncf %340 : vector<8x128xf32> to vector<8x128xbf16>
    %342 = arith.index_cast %c6_i32 : i32 to index
    %c0_73 = arith.constant 0 : index
    %c0_74 = arith.constant 0 : index
    %343 = vector.load %arg8[%342, %c0_73, %c0_74] : memref<8x8x128xbf16, #tpu.memory_space<vmem>>, vector<1x8x128xbf16>
    %344 = vector.shape_cast %343 : vector<1x8x128xbf16> to vector<8x128xbf16>
    %345 = vector.shape_cast %341 : vector<8x128xbf16> to vector<1x8x128xbf16>
    tpu.vector_store %arg8[%342, %c0_73, %c0_74], %345 {strides = array<i32>} : memref<8x8x128xbf16, #tpu.memory_space<vmem>>, vector<1x8x128xbf16>,
    %c7_i32 = arith.constant 7 : i32
    %346 = arith.index_cast %c7_i32 : i32 to index
    %c0_75 = arith.constant 0 : index
    %c0_76 = arith.constant 0 : index
    %347 = vector.load %arg2[%346, %c0_75, %c0_76] : memref<8x8x128xbf16, #tpu.memory_space<vmem>>, vector<1x8x128xbf16>
    %348 = vector.shape_cast %347 : vector<1x8x128xbf16> to vector<8x128xbf16>
    %cst_77 = arith.constant dense<0.000000e+00> : vector<8x384xf32>
    %349 = tpu.matmul %348, %3, %cst_77 {dimension_numbers = #tpu.dot_dimension_numbers<[1], [0], [0], [1], [0, 0, 1, 1], [], []>} : vector<8x128xbf16>, vector<128x384xbf16>, vector<8x384xf32> -> vector<8x384xf32>
    %350 = vector.broadcast %5 : vector<1x384xf32> to vector<8x384xf32>
    %351 = arith.addf %349, %350 : vector<8x384xf32>
    %352 = arith.truncf %333 : vector<8x128xf32> to vector<8x128xbf16>
    %cst_78 = arith.constant dense<0.000000e+00> : vector<8x384xf32>
    %353 = tpu.matmul %352, %4, %cst_78 {dimension_numbers = #tpu.dot_dimension_numbers<[1], [0], [0], [1], [0, 0, 1, 1], [], []>} : vector<8x128xbf16>, vector<128x384xbf16>, vector<8x384xf32> -> vector<8x384xf32>
    %354 = vector.extract_strided_slice %351 {offsets = [0, 0], sizes = [8, 128], strides = [1, 1]} : vector<8x384xf32> to vector<8x128xf32>
    %355 = vector.extract_strided_slice %353 {offsets = [0, 0], sizes = [8, 128], strides = [1, 1]} : vector<8x384xf32> to vector<8x128xf32>
    %356 = arith.addf %354, %355 : vector<8x128xf32>
    %357 = arith.negf %356 : vector<8x128xf32>
    %358 = math.exp %357 : vector<8x128xf32>
    %cst_79 = arith.constant 1.000000e+00 : f32
    %359 = vector.broadcast %cst_79 : f32 to vector<8x128xf32>
    %360 = arith.addf %359, %358 : vector<8x128xf32>
    %361 = arith.divf %359, %360 : vector<8x128xf32>
    %362 = vector.extract_strided_slice %351 {offsets = [0, 128], sizes = [8, 128], strides = [1, 1]} : vector<8x384xf32> to vector<8x128xf32>
    %363 = vector.extract_strided_slice %353 {offsets = [0, 128], sizes = [8, 128], strides = [1, 1]} : vector<8x384xf32> to vector<8x128xf32>
    %364 = arith.addf %362, %363 : vector<8x128xf32>
    %365 = arith.negf %364 : vector<8x128xf32>
    %366 = math.exp %365 : vector<8x128xf32>
    %cst_80 = arith.constant 1.000000e+00 : f32
    %367 = vector.broadcast %cst_80 : f32 to vector<8x128xf32>
    %368 = arith.addf %367, %366 : vector<8x128xf32>
    %369 = arith.divf %367, %368 : vector<8x128xf32>
    %370 = vector.extract_strided_slice %351 {offsets = [0, 256], sizes = [8, 128], strides = [1, 1]} : vector<8x384xf32> to vector<8x128xf32>
    %371 = vector.extract_strided_slice %353 {offsets = [0, 256], sizes = [8, 128], strides = [1, 1]} : vector<8x384xf32> to vector<8x128xf32>
    %372 = vector.broadcast %6 : vector<1x128xf32> to vector<8x128xf32>
    %373 = arith.addf %371, %372 : vector<8x128xf32>
    %374 = arith.mulf %361, %373 : vector<8x128xf32>
    %375 = arith.addf %370, %374 : vector<8x128xf32>
    %376 = math.tanh %375 : vector<8x128xf32>
    %cst_81 = arith.constant 1.000000e+00 : f32
    %377 = vector.broadcast %cst_81 : f32 to vector<8x128xf32>
    %378 = arith.subf %377, %369 : vector<8x128xf32>
    %379 = arith.mulf %378, %376 : vector<8x128xf32>
    %380 = arith.mulf %369, %333 : vector<8x128xf32>
    %381 = arith.addf %379, %380 : vector<8x128xf32>
    %382 = arith.addi %8, %c7_i32 : i32
    %383 = vector.broadcast %382 : i32 to vector<8x1xi32>
    %384 = arith.cmpi slt, %383, %7 : vector<8x1xi32>
    %385 = arith.extui %384 : vector<8x1xi1> to vector<8x1xi32>
    %386 = arith.sitofp %385 : vector<8x1xi32> to vector<8x1xf32>
    %387 = vector.broadcast %386 : vector<8x1xf32> to vector<8x128xf32>
    %388 = arith.mulf %381, %387 : vector<8x128xf32>
    %389 = arith.truncf %388 : vector<8x128xf32> to vector<8x128xbf16>
    %390 = arith.index_cast %c7_i32 : i32 to index
    %c0_82 = arith.constant 0 : index
    %c0_83 = arith.constant 0 : index
    %391 = vector.load %arg8[%390, %c0_82, %c0_83] : memref<8x8x128xbf16, #tpu.memory_space<vmem>>, vector<1x8x128xbf16>
    %392 = vector.shape_cast %391 : vector<1x8x128xbf16> to vector<8x128xbf16>
    %393 = vector.shape_cast %389 : vector<8x128xbf16> to vector<1x8x128xbf16>
    tpu.vector_store %arg8[%390, %c0_82, %c0_83], %393 {strides = array<i32>} : memref<8x8x128xbf16, #tpu.memory_space<vmem>>, vector<1x8x128xbf16>,
    %c8_i32_84 = arith.constant 8 : i32
    %c0_85 = arith.constant 0 : index
    %c0_86 = arith.constant 0 : index
    %394 = vector.load %arg9[%c0_85, %c0_86] : memref<8x128xf32, #tpu.memory_space<vmem>>, vector<8x128xf32>
    tpu.vector_store %arg9[%c0_85, %c0_86], %381 {strides = array<i32>} : memref<8x128xf32, #tpu.memory_space<vmem>>, vector<8x128xf32>,
    return
  }
  func.func @transform_0(%arg0: i32, %arg1: i32) -> (i32, i32, i32) {
    %c0_i32 = arith.constant 0 : i32
    %c0_i32_0 = arith.constant 0 : i32
    return %arg1, %arg0, %c0_i32 : i32, i32, i32
  }
  func.func @transform_1(%arg0: i32, %arg1: i32) -> (i32, i32) {
    %c0_i32 = arith.constant 0 : i32
    %c0_i32_0 = arith.constant 0 : i32
    %c0_i32_1 = arith.constant 0 : i32
    return %c0_i32, %c0_i32_0 : i32, i32
  }
  func.func @transform_2(%arg0: i32, %arg1: i32) -> (i32, i32) {
    %c0_i32 = arith.constant 0 : i32
    %c0_i32_0 = arith.constant 0 : i32
    %c0_i32_1 = arith.constant 0 : i32
    return %c0_i32, %c0_i32_0 : i32, i32
  }
  func.func @transform_3(%arg0: i32, %arg1: i32) -> (i32, i32) {
    %c0_i32 = arith.constant 0 : i32
    %c0_i32_0 = arith.constant 0 : i32
    %c0_i32_1 = arith.constant 0 : i32
    return %c0_i32, %c0_i32_0 : i32, i32
  }
  func.func @transform_4(%arg0: i32, %arg1: i32) -> (i32, i32) {
    %c0_i32 = arith.constant 0 : i32
    %c0_i32_0 = arith.constant 0 : i32
    %c0_i32_1 = arith.constant 0 : i32
    return %c0_i32, %c0_i32_0 : i32, i32
  }
  func.func @transform_5(%arg0: i32, %arg1: i32) -> (i32, i32) {
    %c0_i32 = arith.constant 0 : i32
    %c0_i32_0 = arith.constant 0 : i32
    return %arg0, %c0_i32 : i32, i32
  }
  func.func @transform_6(%arg0: i32, %arg1: i32) -> (i32, i32, i32) {
    %c0_i32 = arith.constant 0 : i32
    %c0_i32_0 = arith.constant 0 : i32
    return %arg1, %arg0, %c0_i32 : i32, i32, i32
  }
}

module attributes {stable_mosaic.version = 11 : i64} {
  func.func @_linear_kernel(%arg0: i32, %arg1: i32, %arg2: memref<16x128xbf16, #tpu.memory_space<vmem>>, %arg3: memref<128x128xbf16, #tpu.memory_space<vmem>>, %arg4: memref<1x128xf32, #tpu.memory_space<vmem>>, %arg5: memref<16x128xf32, #tpu.memory_space<vmem>>) attributes {dimension_semantics = [#tpu.dimension_semantics<parallel>, #tpu.dimension_semantics<parallel>], iteration_bounds = array<i64: 1, 1>, scalar_prefetch = 0 : i64, scratch_operands = 0 : i64, tpu.core_type = #tpu.core_type<tc>, window_params = [{transform_indices = @transform_0, window_bounds = array<i64: 16, 128>}, {transform_indices = @transform_1, window_bounds = array<i64: 128, 128>}, {transform_indices = @transform_2, window_bounds = array<i64: 1, 128>}, {transform_indices = @transform_3, window_bounds = array<i64: 16, 128>}]} {
    %c0 = arith.constant 0 : index
    %c0_0 = arith.constant 0 : index
    %0 = vector.load %arg2[%c0, %c0_0] : memref<16x128xbf16, #tpu.memory_space<vmem>>, vector<16x128xbf16>
    %c0_1 = arith.constant 0 : index
    %c0_2 = arith.constant 0 : index
    %1 = vector.load %arg3[%c0_1, %c0_2] : memref<128x128xbf16, #tpu.memory_space<vmem>>, vector<128x128xbf16>
    %cst = arith.constant dense<0.000000e+00> : vector<16x128xf32>
    %2 = tpu.matmul %0, %1, %cst {dimension_numbers = #tpu.dot_dimension_numbers<[1], [0], [0], [1], [0, 0, 1, 1], [], []>} : vector<16x128xbf16>, vector<128x128xbf16>, vector<16x128xf32> -> vector<16x128xf32>
    %c0_3 = arith.constant 0 : index
    %c0_4 = arith.constant 0 : index
    %3 = vector.load %arg4[%c0_3, %c0_4] : memref<1x128xf32, #tpu.memory_space<vmem>>, vector<1x128xf32>
    %4 = vector.broadcast %3 : vector<1x128xf32> to vector<16x128xf32>
    %5 = arith.addf %2, %4 : vector<16x128xf32>
    %c0_5 = arith.constant 0 : index
    %c0_6 = arith.constant 0 : index
    %6 = vector.load %arg5[%c0_5, %c0_6] : memref<16x128xf32, #tpu.memory_space<vmem>>, vector<16x128xf32>
    tpu.vector_store %arg5[%c0_5, %c0_6], %5 {strides = array<i32>} : memref<16x128xf32, #tpu.memory_space<vmem>>, vector<16x128xf32>,
    return
  }
  func.func @transform_0(%arg0: i32, %arg1: i32) -> (i32, i32) {
    %c0_i32 = arith.constant 0 : i32
    %c0_i32_0 = arith.constant 0 : i32
    return %arg0, %c0_i32 : i32, i32
  }
  func.func @transform_1(%arg0: i32, %arg1: i32) -> (i32, i32) {
    %c0_i32 = arith.constant 0 : i32
    %c0_i32_0 = arith.constant 0 : i32
    return %c0_i32, %arg1 : i32, i32
  }
  func.func @transform_2(%arg0: i32, %arg1: i32) -> (i32, i32) {
    %c0_i32 = arith.constant 0 : i32
    %c0_i32_0 = arith.constant 0 : i32
    return %c0_i32, %arg1 : i32, i32
  }
  func.func @transform_3(%arg0: i32, %arg1: i32) -> (i32, i32) {
    %c0_i32 = arith.constant 0 : i32
    return %arg0, %arg1 : i32, i32
  }
}

</mosaic_0001>

<llo_original>
// kernel: gru4rec_forward.3
$region0: #{gru4rec_forward.3}
  #allocation0 [shape = 'u32[]', space=smem, size = 0x4, offset = 0x4, fixed_abs, tag = 'smem constant byte address 0x4 - core index']
  #allocation1 [shape = 'u32[144,128]{1,0:T(1,128)}', space=vmem, size = 0x12000, scoped, tag = 'internal scratch']
  %s0 = inlined_call_operand.vmem [shape: bf16[16,128], index: 0, kind: input, shape index: {}]
  %s1 = inlined_call_operand.vmem [shape: bf16[128,128], index: 1, kind: input, shape index: {}]
  %s2 = inlined_call_operand.vmem [shape: f32[1,128], index: 2, kind: input, shape index: {}]
  %s3 = inlined_call_operand.vmem [shape: f32[16,128], index: 3, kind: output, shape index: {}]
  %s4 = sld [smem:[#allocation0]]
  $region22: #{gru4rec_forward.3} parent=0
    _
  %s6 = ssub.s32 1, %s4
  %s7 = scalar_select 0, %s6, %s4
  // Predicated region
  $region2: #{gru4rec_forward.3} parent=0 // pred_check
    _
  $region3: #{gru4rec_forward.3} parent=0 // pred_check_branch
    %9 = sbr.rel (0) target = $region5
  $region4: #{gru4rec_forward.3} parent=0 // pred_region
    _
  $region5: #{gru4rec_forward.3} parent=0 // pred_fallthru
    _
  // Predicated region
  $region6: #{gru4rec_forward.3} parent=0 // pred_check
    _
  $region7: #{gru4rec_forward.3} parent=0 // pred_check_branch
    %11 = sbr.rel (0) target = $region9
  $region8: #{gru4rec_forward.3} parent=0 // pred_region
    _
  $region9: #{gru4rec_forward.3} parent=0 // pred_fallthru
    _
  // Predicated region
  $region10: #{gru4rec_forward.3} parent=0 // pred_check
    _
  $region11: #{gru4rec_forward.3} parent=0 // pred_check_branch
    %13 = sbr.rel (0) target = $region13
  $region12: #{gru4rec_forward.3} parent=0 // pred_region
    _
  $region13: #{gru4rec_forward.3} parent=0 // pred_fallthru
    _
  %v15 = vld [vmem:[%s0] sm:$0xf]
  %v16 = vld [vmem:[%s0 + $0x4] sm:$0xf]
  %v17 = vld [vmem:[%s1] sm:$0xf]
  %v18 = vld [vmem:[%s1 + $0x4] sm:$0xf]
  %v19 = vld [vmem:[%s1 + $0x8] sm:$0xf]
  %v20 = vld [vmem:[%s1 + $0xc] sm:$0xf]
  %v21 = vld [vmem:[%s1 + $0x10] sm:$0xf]
  %v22 = vld [vmem:[%s1 + $0x14] sm:$0xf]
  %v23 = vld [vmem:[%s1 + $0x18] sm:$0xf]
  %v24 = vld [vmem:[%s1 + $0x1c] sm:$0xf]
  %v25 = vld [vmem:[%s1 + $0x20] sm:$0xf]
  %v26 = vld [vmem:[%s1 + $0x24] sm:$0xf]
  %v27 = vld [vmem:[%s1 + $0x28] sm:$0xf]
  %v28 = vld [vmem:[%s1 + $0x2c] sm:$0xf]
  %v29 = vld [vmem:[%s1 + $0x30] sm:$0xf]
  %v30 = vld [vmem:[%s1 + $0x34] sm:$0xf]
  %v31 = vld [vmem:[%s1 + $0x38] sm:$0xf]
  %v32 = vld [vmem:[%s1 + $0x3c] sm:$0xf]
  %v33 = vld [vmem:[%s2] sm:$0x1]
  %v35 = vlaneseq
  %v36 = vshrl.u32 %v35, 7
  %v37 = vsub.s32 0, %v36
  %v38 = vrot.slane %v33, %v37
  %v42 = vunpack.c.l.b16 %v15
  %v43 = vunpack.c.l.b16 %v16
  %v44 = vpack.c.b16 %v43, %v42
  %v62 = vunpack.c.l.b16 %v17
  %v63 = vunpack.c.l.b16 %v18
  %v64 = vunpack.c.l.b16 %v19
  %v65 = vunpack.c.l.b16 %v20
  %v66 = vunpack.c.l.b16 %v21
  %v67 = vunpack.c.l.b16 %v22
  %v68 = vunpack.c.l.b16 %v23
  %v69 = vunpack.c.l.b16 %v24
  %v70 = vunpack.c.l.b16 %v25
  %v71 = vunpack.c.l.b16 %v26
  %v72 = vunpack.c.l.b16 %v27
  %v73 = vunpack.c.l.b16 %v28
  %v74 = vunpack.c.l.b16 %v29
  %v75 = vunpack.c.l.b16 %v30
  %v76 = vunpack.c.l.b16 %v31
  %v77 = vunpack.c.l.b16 %v32
  %v78 = vpack.c.b16 %v63, %v62
  %v79 = vpack.c.b16 %v65, %v64
  %v80 = vpack.c.b16 %v67, %v66
  %v81 = vpack.c.b16 %v69, %v68
  %v82 = vpack.c.b16 %v71, %v70
  %v83 = vpack.c.b16 %v73, %v72
  %v84 = vpack.c.b16 %v75, %v74
  %v85 = vpack.c.b16 %v77, %v76
  %94 = vmatprep.subr.bf16.mxu0 0
  %95 = vmatpush1.bf16.msra.mxu0 %v78
  %96 = vmatprep.subr.bf16.mxu0 0
  %97 = vmatpush1.bf16.msra.mxu0 %v79
  %98 = vmatprep.subr.bf16.mxu0 0
  %99 = vmatpush1.bf16.msra.mxu0 %v80
  %100 = vmatprep.subr.bf16.mxu0 0
  %101 = vmatpush1.bf16.msra.mxu0 %v81
  %102 = vmatprep.subr.bf16.mxu0 0
  %103 = vmatpush1.bf16.msra.mxu0 %v82
  %104 = vmatprep.subr.bf16.mxu0 0
  %105 = vmatpush1.bf16.msra.mxu0 %v83
  %106 = vmatprep.subr.bf16.mxu0 0
  %107 = vmatpush1.bf16.msra.mxu0 %v84
  %108 = vmatprep.subr.bf16.mxu0 0
  %109 = vmatpush1.bf16.msra.mxu0 %v85
  %110 = vmatprep.subr.bf16.mxu0 0
  %111 = vmatpush1.bf16.msra.mxu0 0
  %112 = vmatprep.subr.bf16.mxu0 0
  %113 = vmatpush1.bf16.msra.mxu0 0
  %114 = vmatprep.subr.bf16.mxu0 0
  %115 = vmatpush1.bf16.msra.mxu0 0
  %116 = vmatprep.subr.bf16.mxu0 0
  %117 = vmatpush1.bf16.msra.mxu0 0
  %118 = vmatprep.subr.bf16.mxu0 0
  %119 = vmatpush1.bf16.msra.mxu0 0
  %120 = vmatprep.subr.bf16.mxu0 0
  %121 = vmatpush1.bf16.msra.mxu0 0
  %122 = vmatprep.subr.bf16.mxu0 0
  %123 = vmatpush1.bf16.msra.mxu0 0
  %124 = vmatprep.subr.bf16.mxu0 0
  %125 = vmatpush1.bf16.msra.mxu0 0
  %126 = vmatprep.mubr.bf16.mxu0 0
  %127 = vmatmul.mubr.bf16.gmra.mrb[0].mxu0 %v44
  %v128 = vpop.f32.mrb[0].mxu0
  %v129 = vadd.f32 %v38, %v128
  %v130 = vpop.f32.mrb[0].mxu0
  %v131 = vpop.f32.mrb[0].mxu0
  %v132 = vadd.f32 %v38, %v131
  %v133 = vpop.f32.mrb[0].mxu0
  %134 = vdwg.mxu0
  %135 = vst [vmem:[%s3] sm:$0xff] %v129
  %136 = vst [vmem:[%s3 + $0x8] sm:$0xff] %v132
  // Predicated region
  $region14: #{gru4rec_forward.3} parent=0 // pred_check
    _
  $region15: #{gru4rec_forward.3} parent=0 // pred_check_branch
    %138 = sbr.rel (0) target = $region17
  $region16: #{gru4rec_forward.3} parent=0 // pred_region
    _
  $region17: #{gru4rec_forward.3} parent=0 // pred_fallthru
    _
  // Predicated region
  $region18: #{gru4rec_forward.3} parent=0 // pred_check
    _
  $region19: #{gru4rec_forward.3} parent=0 // pred_check_branch
    %140 = sbr.rel (0) target = $region21
  $region20: #{gru4rec_forward.3} parent=0 // pred_region
    _
  $region21: #{gru4rec_forward.3} parent=0 // pred_fallthru
    _

// kernel: gru4rec_forward.2
$region0: #{gru4rec_forward.2}
  #allocation0 [shape = 'u32[]', space=smem, size = 0x4, offset = 0x4, fixed_abs, tag = 'smem constant byte address 0x4 - core index']
  #allocation1 [shape = 'u32[144,128]{1,0:T(1,128)}', space=vmem, size = 0x12000, scoped, tag = 'internal scratch']
  #allocation2 [shape = 'f32[8,128]{1,0:T(8,128)}', space=vmem, size = 0x1000, scoped, tag = 'scratch operand']
  %s0 = inlined_call_operand.vmem [shape: bf16[8,8,128], index: 0, kind: input, shape index: {}]
  %s1 = inlined_call_operand.vmem [shape: bf16[128,384], index: 1, kind: input, shape index: {}]
  %s2 = inlined_call_operand.vmem [shape: f32[1,384], index: 2, kind: input, shape index: {}]
  %s3 = inlined_call_operand.vmem [shape: bf16[128,384], index: 3, kind: input, shape index: {}]
  %s4 = inlined_call_operand.vmem [shape: f32[1,128], index: 4, kind: input, shape index: {}]
  %s5 = inlined_call_operand.vmem [shape: s32[8,1], index: 5, kind: input, shape index: {}]
  %s6 = inlined_call_operand.vmem [shape: bf16[8,8,128], index: 6, kind: output, shape index: {}]
  %s7 = sld [smem:[#allocation0]]
  $region38: #{gru4rec_forward.2} parent=0
    _
  %s9 = ssub.s32 1, %s7
  %s10 = scalar_select 0, %s9, %s7
  // Predicated region
  $region2: #{gru4rec_forward.2} parent=0 // pred_check
    _
  $region3: #{gru4rec_forward.2} parent=0 // pred_check_branch
    %12 = sbr.rel (0) target = $region5
  $region4: #{gru4rec_forward.2} parent=0 // pred_region
    _
  $region5: #{gru4rec_forward.2} parent=0 // pred_fallthru
    _
  // Predicated region
  $region6: #{gru4rec_forward.2} parent=0 // pred_check
    _
  $region7: #{gru4rec_forward.2} parent=0 // pred_check_branch
    %14 = sbr.rel (0) target = $region9
  $region8: #{gru4rec_forward.2} parent=0 // pred_region
    _
  $region9: #{gru4rec_forward.2} parent=0 // pred_fallthru
    _
  // Predicated region
  $region10: #{gru4rec_forward.2} parent=0 // pred_check
    _
  $region11: #{gru4rec_forward.2} parent=0 // pred_check_branch
    %16 = sbr.rel (0) target = $region13
  $region12: #{gru4rec_forward.2} parent=0 // pred_region
    _
  $region13: #{gru4rec_forward.2} parent=0 // pred_fallthru
    _
  // Predicated region
  $region14: #{gru4rec_forward.2} parent=0 // pred_check
    _
  $region15: #{gru4rec_forward.2} parent=0 // pred_check_branch
    %18 = sbr.rel (0) target = $region17
  $region16: #{gru4rec_forward.2} parent=0 // pred_region
    _
  $region17: #{gru4rec_forward.2} parent=0 // pred_fallthru
    _
  // Predicated region
  $region18: #{gru4rec_forward.2} parent=0 // pred_check
    _
  $region19: #{gru4rec_forward.2} parent=0 // pred_check_branch
    %20 = sbr.rel (0) target = $region21
  $region20: #{gru4rec_forward.2} parent=0 // pred_region
    _
  $region21: #{gru4rec_forward.2} parent=0 // pred_fallthru
    _
  // Predicated region
  $region22: #{gru4rec_forward.2} parent=0 // pred_check
    _
  $region23: #{gru4rec_forward.2} parent=0 // pred_check_branch
    %22 = sbr.rel (0) target = $region25
  $region24: #{gru4rec_forward.2} parent=0 // pred_region
    _
  $region25: #{gru4rec_forward.2} parent=0 // pred_fallthru
    _
  %p24 = scmp.eq.s32.totalorder 0, 0
  // Predicated region
  $region26: #{gru4rec_forward.2} parent=0 // pred_check
    %p25 = pneg %p24
  $region27: #{gru4rec_forward.2} parent=0 // pred_check_branch
    %27 = sbr.rel (%p25) target = $region29
  $region28: #{gru4rec_forward.2} parent=0 // pred_region
    %28 = vst [vmem:[#allocation2] sm:$0xff] 0.0
  $region29: #{gru4rec_forward.2} parent=0 // pred_fallthru
    _
  %v29 = vld [vmem:[%s1] sm:$0xff]
  %v30 = vld [vmem:[%s1 + $0x8] sm:$0xf]
  %v31 = vld [vmem:[%s1 + $0xc] sm:$0xff]
  %v32 = vld [vmem:[%s1 + $0x14] sm:$0xf]
  %v33 = vld [vmem:[%s1 + $0x18] sm:$0xff]
  %v34 = vld [vmem:[%s1 + $0x20] sm:$0xf]
  %v35 = vld [vmem:[%s1 + $0x24] sm:$0xff]
  %v36 = vld [vmem:[%s1 + $0x2c] sm:$0xf]
  %v37 = vld [vmem:[%s1 + $0x30] sm:$0xff]
  %v38 = vld [vmem:[%s1 + $0x38] sm:$0xf]
  %v39 = vld [vmem:[%s1 + $0x3c] sm:$0xff]
  %v40 = vld [vmem:[%s1 + $0x44] sm:$0xf]
  %v41 = vld [vmem:[%s1 + $0x48] sm:$0xff]
  %v42 = vld [vmem:[%s1 + $0x50] sm:$0xf]
  %v43 = vld [vmem:[%s1 + $0x54] sm:$0xff]
  %v44 = vld [vmem:[%s1 + $0x5c] sm:$0xf]
  %v45 = vld [vmem:[%s1 + $0x60] sm:$0xff]
  %v46 = vld [vmem:[%s1 + $0x68] sm:$0xf]
  %v47 = vld [vmem:[%s1 + $0x6c] sm:$0xff]
  %v48 = vld [vmem:[%s1 + $0x74] sm:$0xf]
  %v49 = vld [vmem:[%s1 + $0x78] sm:$0xff]
  %v50 = vld [vmem:[%s1 + $0x80] sm:$0xf]
  %v51 = vld [vmem:[%s1 + $0x84] sm:$0xff]
  %v52 = vld [vmem:[%s1 + $0x8c] sm:$0xf]
  %v53 = vld [vmem:[%s1 + $0x90] sm:$0xff]
  %v54 = vld [vmem:[%s1 + $0x98] sm:$0xf]
  %v55 = vld [vmem:[%s1 + $0x9c] sm:$0xff]
  %v56 = vld [vmem:[%s1 + $0xa4] sm:$0xf]
  %v57 = vld [vmem:[%s1 + $0xa8] sm:$0xff]
  %v58 = vld [vmem:[%s1 + $0xb0] sm:$0xf]
  %v59 = vld [vmem:[%s1 + $0xb4] sm:$0xff]
  %v60 = vld [vmem:[%s1 + $0xbc] sm:$0xf]
  %v61 = vld [vmem:[%s3] sm:$0xff]
  %v62 = vld [vmem:[%s3 + $0x8] sm:$0xf]
  %v63 = vld [vmem:[%s3 + $0xc] sm:$0xff]
  %v64 = vld [vmem:[%s3 + $0x14] sm:$0xf]
  %v65 = vld [vmem:[%s3 + $0x18] sm:$0xff]
  %v66 = vld [vmem:[%s3 + $0x20] sm:$0xf]
  %v67 = vld [vmem:[%s3 + $0x24] sm:$0xff]
  %v68 = vld [vmem:[%s3 + $0x2c] sm:$0xf]
  %v69 = vld [vmem:[%s3 + $0x30] sm:$0xff]
  %v70 = vld [vmem:[%s3 + $0x38] sm:$0xf]
  %v71 = vld [vmem:[%s3 + $0x3c] sm:$0xff]
  %v72 = vld [vmem:[%s3 + $0x44] sm:$0xf]
  %v73 = vld [vmem:[%s3 + $0x48] sm:$0xff]
  %v74 = vld [vmem:[%s3 + $0x50] sm:$0xf]
  %v75 = vld [vmem:[%s3 + $0x54] sm:$0xff]
  %v76 = vld [vmem:[%s3 + $0x5c] sm:$0xf]
  %v77 = vld [vmem:[%s3 + $0x60] sm:$0xff]
  %v78 = vld [vmem:[%s3 + $0x68] sm:$0xf]
  %v79 = vld [vmem:[%s3 + $0x6c] sm:$0xff]
  %v80 = vld [vmem:[%s3 + $0x74] sm:$0xf]
  %v81 = vld [vmem:[%s3 + $0x78] sm:$0xff]
  %v82 = vld [vmem:[%s3 + $0x80] sm:$0xf]
  %v83 = vld [vmem:[%s3 + $0x84] sm:$0xff]
  %v84 = vld [vmem:[%s3 + $0x8c] sm:$0xf]
  %v85 = vld [vmem:[%s3 + $0x90] sm:$0xff]
  %v86 = vld [vmem:[%s3 + $0x98] sm:$0xf]
  %v87 = vld [vmem:[%s3 + $0x9c] sm:$0xff]
  %v88 = vld [vmem:[%s3 + $0xa4] sm:$0xf]
  %v89 = vld [vmem:[%s3 + $0xa8] sm:$0xff]
  %v90 = vld [vmem:[%s3 + $0xb0] sm:$0xf]
  %v91 = vld [vmem:[%s3 + $0xb4] sm:$0xff]
  %v92 = vld [vmem:[%s3 + $0xbc] sm:$0xf]
  %v93 = vld [vmem:[%s2] sm:$0x7]
  %v94 = vld [vmem:[%s4] sm:$0x1]
  %v95 = vld [vmem:[%s5] sm:$0xff]
  %s96 = smul.u32 0, 8
  %v97 = vld [vmem:[#allocation2] sm:$0xff]
  %v98 = vld [vmem:[%s0] sm:$0xf]
  %v100 = vlaneseq
  %v101 = vshrl.u32 %v100, 7
  %v102 = vsub.s32 0, %v101
  %v103 = vrot.slane %v93, %v102
  %v104 = vlaneseq
  %v105 = vshrl.u32 %v104, 7
  %v106 = vsub.s32 1, %v105
  %v107 = vrot.slane %v93, %v106
  %v108 = vlaneseq
  %v109 = vshrl.u32 %v108, 7
  %v110 = vsub.s32 2, %v109
  %v111 = vrot.slane %v93, %v110
  %v147 = vunpack.c.l.b16 %v29
  %v148 = vunpack.c.h.b16 %v29
  %v149 = vunpack.c.l.b16 %v30
  %v150 = vunpack.c.l.b16 %v31
  %v151 = vunpack.c.h.b16 %v31
  %v152 = vunpack.c.l.b16 %v32
  %v153 = vunpack.c.l.b16 %v33
  %v154 = vunpack.c.h.b16 %v33
  %v155 = vunpack.c.l.b16 %v34
  %v156 = vunpack.c.l.b16 %v35
  %v157 = vunpack.c.h.b16 %v35
  %v158 = vunpack.c.l.b16 %v36
  %v159 = vunpack.c.l.b16 %v37
  %v160 = vunpack.c.h.b16 %v37
  %v161 = vunpack.c.l.b16 %v38
  %v162 = vunpack.c.l.b16 %v39
  %v163 = vunpack.c.h.b16 %v39
  %v164 = vunpack.c.l.b16 %v40
  %v165 = vunpack.c.l.b16 %v41
  %v166 = vunpack.c.h.b16 %v41
  %v167 = vunpack.c.l.b16 %v42
  %v168 = vunpack.c.l.b16 %v43
  %v169 = vunpack.c.h.b16 %v43
  %v170 = vunpack.c.l.b16 %v44
  %v171 = vunpack.c.l.b16 %v45
  %v172 = vunpack.c.h.b16 %v45
  %v173 = vunpack.c.l.b16 %v46
  %v174 = vunpack.c.l.b16 %v47
  %v175 = vunpack.c.h.b16 %v47
  %v176 = vunpack.c.l.b16 %v48
  %v177 = vunpack.c.l.b16 %v49
  %v178 = vunpack.c.h.b16 %v49
  %v179 = vunpack.c.l.b16 %v50
  %v180 = vunpack.c.l.b16 %v51
  %v181 = vunpack.c.h.b16 %v51
  %v182 = vunpack.c.l.b16 %v52
  %v183 = vunpack.c.l.b16 %v53
  %v184 = vunpack.c.h.b16 %v53
  %v185 = vunpack.c.l.b16 %v54
  %v186 = vunpack.c.l.b16 %v55
  %v187 = vunpack.c.h.b16 %v55
  %v188 = vunpack.c.l.b16 %v56
  %v189 = vunpack.c.l.b16 %v57
  %v190 = vunpack.c.h.b16 %v57
  %v191 = vunpack.c.l.b16 %v58
  %v192 = vunpack.c.l.b16 %v59
  %v193 = vunpack.c.h.b16 %v59
  %v194 = vunpack.c.l.b16 %v60
  %v195 = vpack.c.b16 %v150, %v147
  %v196 = vpack.c.b16 %v151, %v148
  %v197 = vpack.c.b16 %v152, %v149
  %v198 = vpack.c.b16 %v156, %v153
  %v199 = vpack.c.b16 %v157, %v154
  %v200 = vpack.c.b16 %v158, %v155
  %v201 = vpack.c.b16 %v162, %v159
  %v202 = vpack.c.b16 %v163, %v160
  %v203 = vpack.c.b16 %v164, %v161
  %v204 = vpack.c.b16 %v168, %v165
  %v205 = vpack.c.b16 %v169, %v166
  %v206 = vpack.c.b16 %v170, %v167
  %v207 = vpack.c.b16 %v174, %v171
  %v208 = vpack.c.b16 %v175, %v172
  %v209 = vpack.c.b16 %v176, %v173
  %v210 = vpack.c.b16 %v180, %v177
  %v211 = vpack.c.b16 %v181, %v178
  %v212 = vpack.c.b16 %v182, %v179
  %v213 = vpack.c.b16 %v186, %v183
  %v214 = vpack.c.b16 %v187, %v184
  %v215 = vpack.c.b16 %v188, %v185
  %v216 = vpack.c.b16 %v192, %v189
  %v217 = vpack.c.b16 %v193, %v190
  %v218 = vpack.c.b16 %v194, %v191
  %243 = vmatprep.subr.bf16.mxu0 %v196
  %244 = vmatpush1.bf16.msra.mxu0 %v195
  %245 = vmatprep.subr.bf16.mxu0 %v199
  %246 = vmatpush1.bf16.msra.mxu0 %v198
  %247 = vmatprep.subr.bf16.mxu0 %v202
  %248 = vmatpush1.bf16.msra.mxu0 %v201
  %249 = vmatprep.subr.bf16.mxu0 %v205
  %250 = vmatpush1.bf16.msra.mxu0 %v204
  %251 = vmatprep.subr.bf16.mxu0 %v208
  %252 = vmatpush1.bf16.msra.mxu0 %v207
  %253 = vmatprep.subr.bf16.mxu0 %v211
  %254 = vmatpush1.bf16.msra.mxu0 %v210
  %255 = vmatprep.subr.bf16.mxu0 %v214
  %256 = vmatpush1.bf16.msra.mxu0 %v213
  %257 = vmatprep.subr.bf16.mxu0 %v217
  %258 = vmatpush1.bf16.msra.mxu0 %v216
  %259 = vmatprep.subr.bf16.mxu0 0
  %260 = vmatpush1.bf16.msra.mxu0 0
  %261 = vmatprep.subr.bf16.mxu0 0
  %262 = vmatpush1.bf16.msra.mxu0 0
  %263 = vmatprep.subr.bf16.mxu0 0
  %264 = vmatpush1.bf16.msra.mxu0 0
  %265 = vmatprep.subr.bf16.mxu0 0
  %266 = vmatpush1.bf16.msra.mxu0 0
  %267 = vmatprep.subr.bf16.mxu0 0
  %268 = vmatpush1.bf16.msra.mxu0 0
  %269 = vmatprep.subr.bf16.mxu0 0
  %270 = vmatpush1.bf16.msra.mxu0 0
  %271 = vmatprep.subr.bf16.mxu0 0
  %272 = vmatpush1.bf16.msra.mxu0 0
  %273 = vmatprep.subr.bf16.mxu0 0
  %274 = vmatpush1.bf16.msra.mxu0 0
  %275 = vmatprep.mubr.bf16.mxu0 0
  %276 = vmatmul.mubr.bf16.gmra.mrb[0].mxu0 %v98
  %v277 = vpop.f32.mrb[0].mxu0
  %v278 = vadd.f32 %v103, %v277
  %v279 = vpop.f32.mrb[0].mxu0
  %v280 = vadd.f32 %v107, %v279
  %v281 = vpop.f32.mrb[0].mxu0
  %v282 = vpop.f32.mrb[0].mxu0
  %283 = vdwg.mxu0
  %284 = vmatprep.subr.bf16.mxu0 0
  %285 = vmatpush1.bf16.msra.mxu0 %v197
  %286 = vmatprep.subr.bf16.mxu0 0
  %287 = vmatpush1.bf16.msra.mxu0 %v200
  %288 = vmatprep.subr.bf16.mxu0 0
  %289 = vmatpush1.bf16.msra.mxu0 %v203
  %290 = vmatprep.subr.bf16.mxu0 0
  %291 = vmatpush1.bf16.msra.mxu0 %v206
  %292 = vmatprep.subr.bf16.mxu0 0
  %293 = vmatpush1.bf16.msra.mxu0 %v209
  %294 = vmatprep.subr.bf16.mxu0 0
  %295 = vmatpush1.bf16.msra.mxu0 %v212
  %296 = vmatprep.subr.bf16.mxu0 0
  %297 = vmatpush1.bf16.msra.mxu0 %v215
  %298 = vmatprep.subr.bf16.mxu0 0
  %299 = vmatpush1.bf16.msra.mxu0 %v218
  %300 = vmatprep.subr.bf16.mxu0 0
  %301 = vmatpush1.bf16.msra.mxu0 0
  %302 = vmatprep.subr.bf16.mxu0 0
  %303 = vmatpush1.bf16.msra.mxu0 0
  %304 = vmatprep.subr.bf16.mxu0 0
  %305 = vmatpush1.bf16.msra.mxu0 0
  %306 = vmatprep.subr.bf16.mxu0 0
  %307 = vmatpush1.bf16.msra.mxu0 0
  %308 = vmatprep.subr.bf16.mxu0 0
  %309 = vmatpush1.bf16.msra.mxu0 0
  %310 = vmatprep.subr.bf16.mxu0 0
  %311 = vmatpush1.bf16.msra.mxu0 0
  %312 = vmatprep.subr.bf16.mxu0 0
  %313 = vmatpush1.bf16.msra.mxu0 0
  %314 = vmatprep.subr.bf16.mxu0 0
  %315 = vmatpush1.bf16.msra.mxu0 0
  %316 = vmatprep.mubr.bf16.mxu0 0
  %317 = vmatmul.mubr.bf16.gmra.mrb[0].mxu0 %v98
  %v318 = vpop.f32.mrb[0].mxu0
  %v319 = vadd.f32 %v111, %v318
  %v320 = vpop.f32.mrb[0].mxu0
  %v321 = vpop.f32.mrb[0].mxu0
  %v322 = vpop.f32.mrb[0].mxu0
  %323 = vdwg.mxu0
  %v324 = vpack.c.bf16 %v97, %v97
  %v357 = vunpack.c.l.b16 %v61
  %v358 = vunpack.c.h.b16 %v61
  %v359 = vunpack.c.l.b16 %v62
  %v360 = vunpack.c.l.b16 %v63
  %v361 = vunpack.c.h.b16 %v63
  %v362 = vunpack.c.l.b16 %v64
  %v363 = vunpack.c.l.b16 %v65
  %v364 = vunpack.c.h.b16 %v65
  %v365 = vunpack.c.l.b16 %v66
  %v366 = vunpack.c.l.b16 %v67
  %v367 = vunpack.c.h.b16 %v67
  %v368 = vunpack.c.l.b16 %v68
  %v369 = vunpack.c.l.b16 %v69
  %v370 = vunpack.c.h.b16 %v69
  %v371 = vunpack.c.l.b16 %v70
  %v372 = vunpack.c.l.b16 %v71
  %v373 = vunpack.c.h.b16 %v71
  %v374 = vunpack.c.l.b16 %v72
  %v375 = vunpack.c.l.b16 %v73
  %v376 = vunpack.c.h.b16 %v73
  %v377 = vunpack.c.l.b16 %v74
  %v378 = vunpack.c.l.b16 %v75
  %v379 = vunpack.c.h.b16 %v75
  %v380 = vunpack.c.l.b16 %v76
  %v381 = vunpack.c.l.b16 %v77
  %v382 = vunpack.c.h.b16 %v77
  %v383 = vunpack.c.l.b16 %v78
  %v384 = vunpack.c.l.b16 %v79
  %v385 = vunpack.c.h.b16 %v79
  %v386 = vunpack.c.l.b16 %v80
  %v387 = vunpack.c.l.b16 %v81
  %v388 = vunpack.c.h.b16 %v81
  %v389 = vunpack.c.l.b16 %v82
  %v390 = vunpack.c.l.b16 %v83
  %v391 = vunpack.c.h.b16 %v83
  %v392 = vunpack.c.l.b16 %v84
  %v393 = vunpack.c.l.b16 %v85
  %v394 = vunpack.c.h.b16 %v85
  %v395 = vunpack.c.l.b16 %v86
  %v396 = vunpack.c.l.b16 %v87
  %v397 = vunpack.c.h.b16 %v87
  %v398 = vunpack.c.l.b16 %v88
  %v399 = vunpack.c.l.b16 %v89
  %v400 = vunpack.c.h.b16 %v89
  %v401 = vunpack.c.l.b16 %v90
  %v402 = vunpack.c.l.b16 %v91
  %v403 = vunpack.c.h.b16 %v91
  %v404 = vunpack.c.l.b16 %v92
  %v405 = vpack.c.b16 %v360, %v357
  %v406 = vpack.c.b16 %v361, %v358
  %v407 = vpack.c.b16 %v362, %v359
  %v408 = vpack.c.b16 %v366, %v363
  %v409 = vpack.c.b16 %v367, %v364
  %v410 = vpack.c.b16 %v368, %v365
  %v411 = vpack.c.b16 %v372, %v369
  %v412 = vpack.c.b16 %v373, %v370
  %v413 = vpack.c.b16 %v374, %v371
  %v414 = vpack.c.b16 %v378, %v375
  %v415 = vpack.c.b16 %v379, %v376
  %v416 = vpack.c.b16 %v380, %v377
  %v417 = vpack.c.b16 %v384, %v381
  %v418 = vpack.c.b16 %v385, %v382
  %v419 = vpack.c.b16 %v386, %v383
  %v420 = vpack.c.b16 %v390, %v387
  %v421 = vpack.c.b16 %v391, %v388
  %v422 = vpack.c.b16 %v392, %v389
  %v423 = vpack.c.b16 %v396, %v393
  %v424 = vpack.c.b16 %v397, %v394
  %v425 = vpack.c.b16 %v398, %v395
  %v426 = vpack.c.b16 %v402, %v399
  %v427 = vpack.c.b16 %v403, %v400
  %v428 = vpack.c.b16 %v404, %v401
  %453 = vmatprep.subr.bf16.mxu0 %v406
  %454 = vmatpush1.bf16.msra.mxu0 %v405
  %455 = vmatprep.subr.bf16.mxu0 %v409
  %456 = vmatpush1.bf16.msra.mxu0 %v408
  %457 = vmatprep.subr.bf16.mxu0 %v412
  %458 = vmatpush1.bf16.msra.mxu0 %v411
  %459 = vmatprep.subr.bf16.mxu0 %v415
  %460 = vmatpush1.bf16.msra.mxu0 %v414
  %461 = vmatprep.subr.bf16.mxu0 %v418
  %462 = vmatpush1.bf16.msra.mxu0 %v417
  %463 = vmatprep.subr.bf16.mxu0 %v421
  %464 = vmatpush1.bf16.msra.mxu0 %v420
  %465 = vmatprep.subr.bf16.mxu0 %v424
  %466 = vmatpush1.bf16.msra.mxu0 %v423
  %467 = vmatprep.subr.bf16.mxu0 %v427
  %468 = vmatpush1.bf16.msra.mxu0 %v426
  %469 = vmatprep.subr.bf16.mxu0 0
  %470 = vmatpush1.bf16.msra.mxu0 0
  %471 = vmatprep.subr.bf16.mxu0 0
  %472 = vmatpush1.bf16.msra.mxu0 0
  %473 = vmatprep.subr.bf16.mxu0 0
  %474 = vmatpush1.bf16.msra.mxu0 0
  %475 = vmatprep.subr.bf16.mxu0 0
  %476 = vmatpush1.bf16.msra.mxu0 0
  %477 = vmatprep.subr.bf16.mxu0 0
  %478 = vmatpush1.bf16.msra.mxu0 0
  %479 = vmatprep.subr.bf16.mxu0 0
  %480 = vmatpush1.bf16.msra.mxu0 0
  %481 = vmatprep.subr.bf16.mxu0 0
  %482 = vmatpush1.bf16.msra.mxu0 0
  %483 = vmatprep.subr.bf16.mxu0 0
  %484 = vmatpush1.bf16.msra.mxu0 0
  %485 = vmatprep.mubr.bf16.mxu0 0
  %486 = vmatmul.mubr.bf16.gmra.mrb[0].mxu0 %v324
  %v487 = vpop.f32.mrb[0].mxu0
  %v488 = vadd.f32 0.0, %v487
  %v489 = vpop.f32.mrb[0].mxu0
  %v490 = vadd.f32 0.0, %v489
  %v491 = vpop.f32.mrb[0].mxu0
  %v492 = vpop.f32.mrb[0].mxu0
  %493 = vdwg.mxu0
  %494 = vmatprep.subr.bf16.mxu0 0
  %495 = vmatpush1.bf16.msra.mxu0 %v407
  %496 = vmatprep.subr.bf16.mxu0 0
  %497 = vmatpush1.bf16.msra.mxu0 %v410
  %498 = vmatprep.subr.bf16.mxu0 0
  %499 = vmatpush1.bf16.msra.mxu0 %v413
  %500 = vmatprep.subr.bf16.mxu0 0
  %501 = vmatpush1.bf16.msra.mxu0 %v416
  %502 = vmatprep.subr.bf16.mxu0 0
  %503 = vmatpush1.bf16.msra.mxu0 %v419
  %504 = vmatprep.subr.bf16.mxu0 0
  %505 = vmatpush1.bf16.msra.mxu0 %v422
  %506 = vmatprep.subr.bf16.mxu0 0
  %507 = vmatpush1.bf16.msra.mxu0 %v425
  %508 = vmatprep.subr.bf16.mxu0 0
  %509 = vmatpush1.bf16.msra.mxu0 %v428
  %510 = vmatprep.subr.bf16.mxu0 0
  %511 = vmatpush1.bf16.msra.mxu0 0
  %512 = vmatprep.subr.bf16.mxu0 0
  %513 = vmatpush1.bf16.msra.mxu0 0
  %514 = vmatprep.subr.bf16.mxu0 0
  %515 = vmatpush1.bf16.msra.mxu0 0
  %516 = vmatprep.subr.bf16.mxu0 0
  %517 = vmatpush1.bf16.msra.mxu0 0
  %518 = vmatprep.subr.bf16.mxu0 0
  %519 = vmatpush1.bf16.msra.mxu0 0
  %520 = vmatprep.subr.bf16.mxu0 0
  %521 = vmatpush1.bf16.msra.mxu0 0
  %522 = vmatprep.subr.bf16.mxu0 0
  %523 = vmatpush1.bf16.msra.mxu0 0
  %524 = vmatprep.subr.bf16.mxu0 0
  %525 = vmatpush1.bf16.msra.mxu0 0
  %526 = vmatprep.mubr.bf16.mxu0 0
  %527 = vmatmul.mubr.bf16.gmra.mrb[0].mxu0 %v324
  %v528 = vpop.f32.mrb[0].mxu0
  %v529 = vadd.f32 0.0, %v528
  %v530 = vpop.f32.mrb[0].mxu0
  %v531 = vpop.f32.mrb[0].mxu0
  %v532 = vpop.f32.mrb[0].mxu0
  %533 = vdwg.mxu0
  %v534 = vadd.f32 %v278, %v488
  %v535 = vxor.u32 %v534, 2147483648
  %v536 = vmul.f32 %v535, 1.442695
  %v537 = vpow.pop %v536
  %v538 = vadd.f32 %v537, 1.0
  %v539 = vrcp.pop %v538
  %v540 = vmul.f32 1.0, %v539
  %v541 = vadd.f32 %v280, %v490
  %v542 = vxor.u32 %v541, 2147483648
  %v543 = vmul.f32 %v542, 1.442695
  %v544 = vpow.pop %v543
  %v545 = vadd.f32 %v544, 1.0
  %v546 = vrcp.pop %v545
  %v547 = vmul.f32 1.0, %v546
  %v549 = vlaneseq
  %v550 = vshrl.u32 %v549, 7
  %v551 = vsub.s32 0, %v550
  %v552 = vrot.slane %v94, %v551
  %v554 = vadd.f32 %v529, %v552
  %v555 = vmul.f32 %v540, %v554
  %v556 = vadd.f32 %v319, %v555
  %v557 = vtanh.pop %v556
  %v558 = vsub.f32 1.0, %v547
  %v559 = vmul.f32 %v558, %v557
  %v560 = vmul.f32 %v547, %v97
  %v561 = vadd.f32 %v559, %v560
  %v562 = vstv %s96
  %vm563 = vcmp.lt.s32.totalorder %v562, %v95
  %v564 = vsel %vm563, 1, 0
  %v565 = vcvt.s32.f32 %v564
  %567 = vset.pattern.permute.xlu0 0
  %568 = vperm.xlu0 %567, %v565
  %v569 = vpop.permute.xlu0 %568
  %v571 = vmul.f32 %v561, %v569
  %v572 = vpack.c.bf16 %v571, %v571
  %573 = vst [vmem:[%s6] sm:$0xf] %v572
  %s574 = scalar_lea.vmem %s0, 4
  %v575 = vld [vmem:[%s574] sm:$0xf]
  %576 = vmatprep.subr.bf16.mxu0 %v196
  %577 = vmatpush1.bf16.msra.mxu0 %v195
  %578 = vmatprep.subr.bf16.mxu0 %v199
  %579 = vmatpush1.bf16.msra.mxu0 %v198
  %580 = vmatprep.subr.bf16.mxu0 %v202
  %581 = vmatpush1.bf16.msra.mxu0 %v201
  %582 = vmatprep.subr.bf16.mxu0 %v205
  %583 = vmatpush1.bf16.msra.mxu0 %v204
  %584 = vmatprep.subr.bf16.mxu0 %v208
  %585 = vmatpush1.bf16.msra.mxu0 %v207
  %586 = vmatprep.subr.bf16.mxu0 %v211
  %587 = vmatpush1.bf16.msra.mxu0 %v210
  %588 = vmatprep.subr.bf16.mxu0 %v214
  %589 = vmatpush1.bf16.msra.mxu0 %v213
  %590 = vmatprep.subr.bf16.mxu0 %v217
  %591 = vmatpush1.bf16.msra.mxu0 %v216
  %592 = vmatprep.subr.bf16.mxu0 0
  %593 = vmatpush1.bf16.msra.mxu0 0
  %594 = vmatprep.subr.bf16.mxu0 0
  %595 = vmatpush1.bf16.msra.mxu0 0
  %596 = vmatprep.subr.bf16.mxu0 0
  %597 = vmatpush1.bf16.msra.mxu0 0
  %598 = vmatprep.subr.bf16.mxu0 0
  %599 = vmatpush1.bf16.msra.mxu0 0
  %600 = vmatprep.subr.bf16.mxu0 0
  %601 = vmatpush1.bf16.msra.mxu0 0
  %602 = vmatprep.subr.bf16.mxu0 0
  %603 = vmatpush1.bf16.msra.mxu0 0
  %604 = vmatprep.subr.bf16.mxu0 0
  %605 = vmatpush1.bf16.msra.mxu0 0
  %606 = vmatprep.subr.bf16.mxu0 0
  %607 = vmatpush1.bf16.msra.mxu0 0
  %608 = vmatprep.mubr.bf16.mxu0 0
  %609 = vmatmul.mubr.bf16.gmra.mrb[0].mxu0 %v575
  %v610 = vpop.f32.mrb[0].mxu0
  %v611 = vadd.f32 %v103, %v610
  %v612 = vpop.f32.mrb[0].mxu0
  %v613 = vadd.f32 %v107, %v612
  %v614 = vpop.f32.mrb[0].mxu0
  %v615 = vpop.f32.mrb[0].mxu0
  %616 = vdwg.mxu0
  %617 = vmatprep.subr.bf16.mxu0 0
  %618 = vmatpush1.bf16.msra.mxu0 %v197
  %619 = vmatprep.subr.bf16.mxu0 0
  %620 = vmatpush1.bf16.msra.mxu0 %v200
  %621 = vmatprep.subr.bf16.mxu0 0
  %622 = vmatpush1.bf16.msra.mxu0 %v203
  %623 = vmatprep.subr.bf16.mxu0 0
  %624 = vmatpush1.bf16.msra.mxu0 %v206
  %625 = vmatprep.subr.bf16.mxu0 0
  %626 = vmatpush1.bf16.msra.mxu0 %v209
  %627 = vmatprep.subr.bf16.mxu0 0
  %628 = vmatpush1.bf16.msra.mxu0 %v212
  %629 = vmatprep.subr.bf16.mxu0 0
  %630 = vmatpush1.bf16.msra.mxu0 %v215
  %631 = vmatprep.subr.bf16.mxu0 0
  %632 = vmatpush1.bf16.msra.mxu0 %v218
  %633 = vmatprep.subr.bf16.mxu0 0
  %634 = vmatpush1.bf16.msra.mxu0 0
  %635 = vmatprep.subr.bf16.mxu0 0
  %636 = vmatpush1.bf16.msra.mxu0 0
  %637 = vmatprep.subr.bf16.mxu0 0
  %638 = vmatpush1.bf16.msra.mxu0 0
  %639 = vmatprep.subr.bf16.mxu0 0
  %640 = vmatpush1.bf16.msra.mxu0 0
  %641 = vmatprep.subr.bf16.mxu0 0
  %642 = vmatpush1.bf16.msra.mxu0 0
  %643 = vmatprep.subr.bf16.mxu0 0
  %644 = vmatpush1.bf16.msra.mxu0 0
  %645 = vmatprep.subr.bf16.mxu0 0
  %646 = vmatpush1.bf16.msra.mxu0 0
  %647 = vmatprep.subr.bf16.mxu0 0
  %648 = vmatpush1.bf16.msra.mxu0 0
  %649 = vmatprep.mubr.bf16.mxu0 0
  %650 = vmatmul.mubr.bf16.gmra.mrb[0].mxu0 %v575
  %v651 = vpop.f32.mrb[0].mxu0
  %v652 = vadd.f32 %v111, %v651
  %v653 = vpop.f32.mrb[0].mxu0
  %v654 = vpop.f32.mrb[0].mxu0
  %v655 = vpop.f32.mrb[0].mxu0
  %656 = vdwg.mxu0
  %v657 = vpack.c.bf16 %v561, %v561
  %658 = vmatprep.subr.bf16.mxu0 %v406
  %659 = vmatpush1.bf16.msra.mxu0 %v405
  %660 = vmatprep.subr.bf16.mxu0 %v409
  %661 = vmatpush1.bf16.msra.mxu0 %v408
  %662 = vmatprep.subr.bf16.mxu0 %v412
  %663 = vmatpush1.bf16.msra.mxu0 %v411
  %664 = vmatprep.subr.bf16.mxu0 %v415
  %665 = vmatpush1.bf16.msra.mxu0 %v414
  %666 = vmatprep.subr.bf16.mxu0 %v418
  %667 = vmatpush1.bf16.msra.mxu0 %v417
  %668 = vmatprep.subr.bf16.mxu0 %v421
  %669 = vmatpush1.bf16.msra.mxu0 %v420
  %670 = vmatprep.subr.bf16.mxu0 %v424
  %671 = vmatpush1.bf16.msra.mxu0 %v423
  %672 = vmatprep.subr.bf16.mxu0 %v427
  %673 = vmatpush1.bf16.msra.mxu0 %v426
  %674 = vmatprep.subr.bf16.mxu0 0
  %675 = vmatpush1.bf16.msra.mxu0 0
  %676 = vmatprep.subr.bf16.mxu0 0
  %677 = vmatpush1.bf16.msra.mxu0 0
  %678 = vmatprep.subr.bf16.mxu0 0
  %679 = vmatpush1.bf16.msra.mxu0 0
  %680 = vmatprep.subr.bf16.mxu0 0
  %681 = vmatpush1.bf16.msra.mxu0 0
  %682 = vmatprep.subr.bf16.mxu0 0
  %683 = vmatpush1.bf16.msra.mxu0 0
  %684 = vmatprep.subr.bf16.mxu0 0
  %685 = vmatpush1.bf16.msra.mxu0 0
  %686 = vmatprep.subr.bf16.mxu0 0
  %687 = vmatpush1.bf16.msra.mxu0 0
  %688 = vmatprep.subr.bf16.mxu0 0
  %689 = vmatpush1.bf16.msra.mxu0 0
  %690 = vmatprep.mubr.bf16.mxu0 0
  %691 = vmatmul.mubr.bf16.gmra.mrb[0].mxu0 %v657
  %v692 = vpop.f32.mrb[0].mxu0
  %v693 = vadd.f32 0.0, %v692
  %v694 = vpop.f32.mrb[0].mxu0
  %v695 = vadd.f32 0.0, %v694
  %v696 = vpop.f32.mrb[0].mxu0
  %v697 = vpop.f32.mrb[0].mxu0
  %698 = vdwg.mxu0
  %699 = vmatprep.subr.bf16.mxu0 0
  %700 = vmatpush1.bf16.msra.mxu0 %v407
  %701 = vmatprep.subr.bf16.mxu0 0
  %702 = vmatpush1.bf16.msra.mxu0 %v410
  %703 = vmatprep.subr.bf16.mxu0 0
  %704 = vmatpush1.bf16.msra.mxu0 %v413
  %705 = vmatprep.subr.bf16.mxu0 0
  %706 = vmatpush1.bf16.msra.mxu0 %v416
  %707 = vmatprep.subr.bf16.mxu0 0
  %708 = vmatpush1.bf16.msra.mxu0 %v419
  %709 = vmatprep.subr.bf16.mxu0 0
  %710 = vmatpush1.bf16.msra.mxu0 %v422
  %711 = vmatprep.subr.bf16.mxu0 0
  %712 = vmatpush1.bf16.msra.mxu0 %v425
  %713 = vmatprep.subr.bf16.mxu0 0
  %714 = vmatpush1.bf16.msra.mxu0 %v428
  %715 = vmatprep.subr.bf16.mxu0 0
  %716 = vmatpush1.bf16.msra.mxu0 0
  %717 = vmatprep.subr.bf16.mxu0 0
  %718 = vmatpush1.bf16.msra.mxu0 0
  %719 = vmatprep.subr.bf16.mxu0 0
  %720 = vmatpush1.bf16.msra.mxu0 0
  %721 = vmatprep.subr.bf16.mxu0 0
  %722 = vmatpush1.bf16.msra.mxu0 0
  %723 = vmatprep.subr.bf16.mxu0 0
  %724 = vmatpush1.bf16.msra.mxu0 0
  %725 = vmatprep.subr.bf16.mxu0 0
  %726 = vmatpush1.bf16.msra.mxu0 0
  %727 = vmatprep.subr.bf16.mxu0 0
  %728 = vmatpush1.bf16.msra.mxu0 0
  %729 = vmatprep.subr.bf16.mxu0 0
  %730 = vmatpush1.bf16.msra.mxu0 0
  %731 = vmatprep.mubr.bf16.mxu0 0
  %732 = vmatmul.mubr.bf16.gmra.mrb[0].mxu0 %v657
  %v733 = vpop.f32.mrb[0].mxu0
  %v734 = vadd.f32 0.0, %v733
  %v735 = vpop.f32.mrb[0].mxu0
  %v736 = vpop.f32.mrb[0].mxu0
  %v737 = vpop.f32.mrb[0].mxu0
  %738 = vdwg.mxu0
  %v739 = vadd.f32 %v611, %v693
  %v740 = vxor.u32 %v739, 2147483648
  %v741 = vmul.f32 %v740, 1.442695
  %v742 = vpow.pop %v741
  %v743 = vadd.f32 %v742, 1.0
  %v744 = vrcp.pop %v743
  %v745 = vmul.f32 1.0, %v744
  %v746 = vadd.f32 %v613, %v695
  %v747 = vxor.u32 %v746, 2147483648
  %v748 = vmul.f32 %v747, 1.442695
  %v749 = vpow.pop %v748
  %v750 = vadd.f32 %v749, 1.0
  %v751 = vrcp.pop %v750
  %v752 = vmul.f32 1.0, %v751
  %v753 = vadd.f32 %v734, %v552
  %v754 = vmul.f32 %v745, %v753
  %v755 = vadd.f32 %v652, %v754
  %v756 = vtanh.pop %v755
  %v757 = vsub.f32 1.0, %v752
  %v758 = vmul.f32 %v757, %v756
  %v759 = vmul.f32 %v752, %v561
  %v760 = vadd.f32 %v758, %v759
  %s761 = sadd.s32 %s96, 1
  %v762 = vstv %s761
  %vm763 = vcmp.lt.s32.totalorder %v762, %v95
  %v764 = vsel %vm763, 1, 0
  %v765 = vcvt.s32.f32 %v764
  %767 = vset.pattern.permute.xlu0 0
  %768 = vperm.xlu0 %767, %v765
  %v769 = vpop.permute.xlu0 %768
  %v771 = vmul.f32 %v760, %v769
  %v772 = vpack.c.bf16 %v771, %v771
  %s773 = scalar_lea.vmem %s6, 4
  %774 = vst [vmem:[%s773] sm:$0xf] %v772
  %s775 = scalar_lea.vmem %s0, 8
  %v776 = vld [vmem:[%s775] sm:$0xf]
  %777 = vmatprep.subr.bf16.mxu0 %v196
  %778 = vmatpush1.bf16.msra.mxu0 %v195
  %779 = vmatprep.subr.bf16.mxu0 %v199
  %780 = vmatpush1.bf16.msra.mxu0 %v198
  %781 = vmatprep.subr.bf16.mxu0 %v202
  %782 = vmatpush1.bf16.msra.mxu0 %v201
  %783 = vmatprep.subr.bf16.mxu0 %v205
  %784 = vmatpush1.bf16.msra.mxu0 %v204
  %785 = vmatprep.subr.bf16.mxu0 %v208
  %786 = vmatpush1.bf16.msra.mxu0 %v207
  %787 = vmatprep.subr.bf16.mxu0 %v211
  %788 = vmatpush1.bf16.msra.mxu0 %v210
  %789 = vmatprep.subr.bf16.mxu0 %v214
  %790 = vmatpush1.bf16.msra.mxu0 %v213
  %791 = vmatprep.subr.bf16.mxu0 %v217
  %792 = vmatpush1.bf16.msra.mxu0 %v216
  %793 = vmatprep.subr.bf16.mxu0 0
  %794 = vmatpush1.bf16.msra.mxu0 0
  %795 = vmatprep.subr.bf16.mxu0 0
  %796 = vmatpush1.bf16.msra.mxu0 0
  %797 = vmatprep.subr.bf16.mxu0 0
  %798 = vmatpush1.bf16.msra.mxu0 0
  %799 = vmatprep.subr.bf16.mxu0 0
  %800 = vmatpush1.bf16.msra.mxu0 0
  %801 = vmatprep.subr.bf16.mxu0 0
  %802 = vmatpush1.bf16.msra.mxu0 0
  %803 = vmatprep.subr.bf16.mxu0 0
  %804 = vmatpush1.bf16.msra.mxu0 0
  %805 = vmatprep.subr.bf16.mxu0 0
  %806 = vmatpush1.bf16.msra.mxu0 0
  %807 = vmatprep.subr.bf16.mxu0 0
  %808 = vmatpush1.bf16.msra.mxu0 0
  %809 = vmatprep.mubr.bf16.mxu0 0
  %810 = vmatmul.mubr.bf16.gmra.mrb[0].mxu0 %v776
  %v811 = vpop.f32.mrb[0].mxu0
  %v812 = vadd.f32 %v103, %v811
  %v813 = vpop.f32.mrb[0].mxu0
  %v814 = vadd.f32 %v107, %v813
  %v815 = vpop.f32.mrb[0].mxu0
  %v816 = vpop.f32.mrb[0].mxu0
  %817 = vdwg.mxu0
  %818 = vmatprep.subr.bf16.mxu0 0
  %819 = vmatpush1.bf16.msra.mxu0 %v197
  %820 = vmatprep.subr.bf16.mxu0 0
  %821 = vmatpush1.bf16.msra.mxu0 %v200
  %822 = vmatprep.subr.bf16.mxu0 0
  %823 = vmatpush1.bf16.msra.mxu0 %v203
  %824 = vmatprep.subr.bf16.mxu0 0
  %825 = vmatpush1.bf16.msra.mxu0 %v206
  %826 = vmatprep.subr.bf16.mxu0 0
  %827 = vmatpush1.bf16.msra.mxu0 %v209
  %828 = vmatprep.subr.bf16.mxu0 0
  %829 = vmatpush1.bf16.msra.mxu0 %v212
  %830 = vmatprep.subr.bf16.mxu0 0
  %831 = vmatpush1.bf16.msra.mxu0 %v215
  %832 = vmatprep.subr.bf16.mxu0 0
  %833 = vmatpush1.bf16.msra.mxu0 %v218
  %834 = vmatprep.subr.bf16.mxu0 0
  %835 = vmatpush1.bf16.msra.mxu0 0
  %836 = vmatprep.subr.bf16.mxu0 0
  %837 = vmatpush1.bf16.msra.mxu0 0
  %838 = vmatprep.subr.bf16.mxu0 0
  %839 = vmatpush1.bf16.msra.mxu0 0
  %840 = vmatprep.subr.bf16.mxu0 0
  %841 = vmatpush1.bf16.msra.mxu0 0
  %842 = vmatprep.subr.bf16.mxu0 0
  %843 = vmatpush1.bf16.msra.mxu0 0
  %844 = vmatprep.subr.bf16.mxu0 0
  %845 = vmatpush1.bf16.msra.mxu0 0
  %846 = vmatprep.subr.bf16.mxu0 0
  %847 = vmatpush1.bf16.msra.mxu0 0
  %848 = vmatprep.subr.bf16.mxu0 0
  %849 = vmatpush1.bf16.msra.mxu0 0
  %850 = vmatprep.mubr.bf16.mxu0 0
  %851 = vmatmul.mubr.bf16.gmra.mrb[0].mxu0 %v776
  %v852 = vpop.f32.mrb[0].mxu0
  %v853 = vadd.f32 %v111, %v852
  %v854 = vpop.f32.mrb[0].mxu0
  %v855 = vpop.f32.mrb[0].mxu0
  %v856 = vpop.f32.mrb[0].mxu0
  %857 = vdwg.mxu0
  %v858 = vpack.c.bf16 %v760, %v760
  %859 = vmatprep.subr.bf16.mxu0 %v406
  %860 = vmatpush1.bf16.msra.mxu0 %v405
  %861 = vmatprep.subr.bf16.mxu0 %v409
  %862 = vmatpush1.bf16.msra.mxu0 %v408
  %863 = vmatprep.subr.bf16.mxu0 %v412
  %864 = vmatpush1.bf16.msra.mxu0 %v411
  %865 = vmatprep.subr.bf16.mxu0 %v415
  %866 = vmatpush1.bf16.msra.mxu0 %v414
  %867 = vmatprep.subr.bf16.mxu0 %v418
  %868 = vmatpush1.bf16.msra.mxu0 %v417
  %869 = vmatprep.subr.bf16.mxu0 %v421
  %870 = vmatpush1.bf16.msra.mxu0 %v420
  %871 = vmatprep.subr.bf16.mxu0 %v424
  %872 = vmatpush1.bf16.msra.mxu0 %v423
  %873 = vmatprep.subr.bf16.mxu0 %v427
  %874 = vmatpush1.bf16.msra.mxu0 %v426
  %875 = vmatprep.subr.bf16.mxu0 0
  %876 = vmatpush1.bf16.msra.mxu0 0
  %877 = vmatprep.subr.bf16.mxu0 0
  %878 = vmatpush1.bf16.msra.mxu0 0
  %879 = vmatprep.subr.bf16.mxu0 0
  %880 = vmatpush1.bf16.msra.mxu0 0
  %881 = vmatprep.subr.bf16.mxu0 0
  %882 = vmatpush1.bf16.msra.mxu0 0
  %883 = vmatprep.subr.bf16.mxu0 0
  %884 = vmatpush1.bf16.msra.mxu0 0
  %885 = vmatprep.subr.bf16.mxu0 0
  %886 = vmatpush1.bf16.msra.mxu0 0
  %887 = vmatprep.subr.bf16.mxu0 0
  %888 = vmatpush1.bf16.msra.mxu0 0
  %889 = vmatprep.subr.bf16.mxu0 0
  %890 = vmatpush1.bf16.msra.mxu0 0
  %891 = vmatprep.mubr.bf16.mxu0 0
  %892 = vmatmul.mubr.bf16.gmra.mrb[0].mxu0 %v858
  %v893 = vpop.f32.mrb[0].mxu0
  %v894 = vadd.f32 0.0, %v893
  %v895 = vpop.f32.mrb[0].mxu0
  %v896 = vadd.f32 0.0, %v895
  %v897 = vpop.f32.mrb[0].mxu0
  %v898 = vpop.f32.mrb[0].mxu0
  %899 = vdwg.mxu0
  %900 = vmatprep.subr.bf16.mxu0 0
  %901 = vmatpush1.bf16.msra.mxu0 %v407
  %902 = vmatprep.subr.bf16.mxu0 0
  %903 = vmatpush1.bf16.msra.mxu0 %v410
  %904 = vmatprep.subr.bf16.mxu0 0
  %905 = vmatpush1.bf16.msra.mxu0 %v413
  %906 = vmatprep.subr.bf16.mxu0 0
  %907 = vmatpush1.bf16.msra.mxu0 %v416
  %908 = vmatprep.subr.bf16.mxu0 0
  %909 = vmatpush1.bf16.msra.mxu0 %v419
  %910 = vmatprep.subr.bf16.mxu0 0
  %911 = vmatpush1.bf16.msra.mxu0 %v422
  %912 = vmatprep.subr.bf16.mxu0 0
  %913 = vmatpush1.bf16.msra.mxu0 %v425
  %914 = vmatprep.subr.bf16.mxu0 0
  %915 = vmatpush1.bf16.msra.mxu0 %v428
  %916 = vmatprep.subr.bf16.mxu0 0
  %917 = vmatpush1.bf16.msra.mxu0 0
  %918 = vmatprep.subr.bf16.mxu0 0
  %919 = vmatpush1.bf16.msra.mxu0 0
  %920 = vmatprep.subr.bf16.mxu0 0
  %921 = vmatpush1.bf16.msra.mxu0 0
  %922 = vmatprep.subr.bf16.mxu0 0
  %923 = vmatpush1.bf16.msra.mxu0 0
  %924 = vmatprep.subr.bf16.mxu0 0
  %925 = vmatpush1.bf16.msra.mxu0 0
  %926 = vmatprep.subr.bf16.mxu0 0
  %927 = vmatpush1.bf16.msra.mxu0 0
  %928 = vmatprep.subr.bf16.mxu0 0
  %929 = vmatpush1.bf16.msra.mxu0 0
  %930 = vmatprep.subr.bf16.mxu0 0
  %931 = vmatpush1.bf16.msra.mxu0 0
  %932 = vmatprep.mubr.bf16.mxu0 0
  %933 = vmatmul.mubr.bf16.gmra.mrb[0].mxu0 %v858
  %v934 = vpop.f32.mrb[0].mxu0
  %v935 = vadd.f32 0.0, %v934
  %v936 = vpop.f32.mrb[0].mxu0
  %v937 = vpop.f32.mrb[0].mxu0
  %v938 = vpop.f32.mrb[0].mxu0
  %939 = vdwg.mxu0
  %v940 = vadd.f32 %v812, %v894
  %v941 = vxor.u32 %v940, 2147483648
  %v942 = vmul.f32 %v941, 1.442695
  %v943 = vpow.pop %v942
  %v944 = vadd.f32 %v943, 1.0
  %v945 = vrcp.pop %v944
  %v946 = vmul.f32 1.0, %v945
  %v947 = vadd.f32 %v814, %v896
  %v948 = vxor.u32 %v947, 2147483648
  %v949 = vmul.f32 %v948, 1.442695
  %v950 = vpow.pop %v949
  %v951 = vadd.f32 %v950, 1.0
  %v952 = vrcp.pop %v951
  %v953 = vmul.f32 1.0, %v952
  %v954 = vadd.f32 %v935, %v552
  %v955 = vmul.f32 %v946, %v954
  %v956 = vadd.f32 %v853, %v955
  %v957 = vtanh.pop %v956
  %v958 = vsub.f32 1.0, %v953
  %v959 = vmul.f32 %v958, %v957
  %v960 = vmul.f32 %v953, %v760
  %v961 = vadd.f32 %v959, %v960
  %s962 = sadd.s32 %s96, 2
  %v963 = vstv %s962
  %vm964 = vcmp.lt.s32.totalorder %v963, %v95
  %v965 = vsel %vm964, 1, 0
  %v966 = vcvt.s32.f32 %v965
  %968 = vset.pattern.permute.xlu0 0
  %969 = vperm.xlu0 %968, %v966
  %v970 = vpop.permute.xlu0 %969
  %v972 = vmul.f32 %v961, %v970
  %v973 = vpack.c.bf16 %v972, %v972
  %s974 = scalar_lea.vmem %s6, 8
  %975 = vst [vmem:[%s974] sm:$0xf] %v973
  %s976 = scalar_lea.vmem %s0, 12
  %v977 = vld [vmem:[%s976] sm:$0xf]
  %978 = vmatprep.subr.bf16.mxu0 %v196
  %979 = vmatpush1.bf16.msra.mxu0 %v195
  %980 = vmatprep.subr.bf16.mxu0 %v199
  %981 = vmatpush1.bf16.msra.mxu0 %v198
  %982 = vmatprep.subr.bf16.mxu0 %v202
  %983 = vmatpush1.bf16.msra.mxu0 %v201
  %984 = vmatprep.subr.bf16.mxu0 %v205
  %985 = vmatpush1.bf16.msra.mxu0 %v204
  %986 = vmatprep.subr.bf16.mxu0 %v208
  %987 = vmatpush1.bf16.msra.mxu0 %v207
  %988 = vmatprep.subr.bf16.mxu0 %v211
  %989 = vmatpush1.bf16.msra.mxu0 %v210
  %990 = vmatprep.subr.bf16.mxu0 %v214
  %991 = vmatpush1.bf16.msra.mxu0 %v213
  %992 = vmatprep.subr.bf16.mxu0 %v217
  %993 = vmatpush1.bf16.msra.mxu0 %v216
  %994 = vmatprep.subr.bf16.mxu0 0
  %995 = vmatpush1.bf16.msra.mxu0 0
  %996 = vmatprep.subr.bf16.mxu0 0
  %997 = vmatpush1.bf16.msra.mxu0 0
  %998 = vmatprep.subr.bf16.mxu0 0
  %999 = vmatpush1.bf16.msra.mxu0 0
  %1000 = vmatprep.subr.bf16.mxu0 0
  %1001 = vmatpush1.bf16.msra.mxu0 0
  %1002 = vmatprep.subr.bf16.mxu0 0
  %1003 = vmatpush1.bf16.msra.mxu0 0
  %1004 = vmatprep.subr.bf16.mxu0 0
  %1005 = vmatpush1.bf16.msra.mxu0 0
  %1006 = vmatprep.subr.bf16.mxu0 0
  %1007 = vmatpush1.bf16.msra.mxu0 0
  %1008 = vmatprep.subr.bf16.mxu0 0
  %1009 = vmatpush1.bf16.msra.mxu0 0
  %1010 = vmatprep.mubr.bf16.mxu0 0
  %1011 = vmatmul.mubr.bf16.gmra.mrb[0].mxu0 %v977
  %v1012 = vpop.f32.mrb[0].mxu0
  %v1013 = vadd.f32 %v103, %v1012
  %v1014 = vpop.f32.mrb[0].mxu0
  %v1015 = vadd.f32 %v107, %v1014
  %v1016 = vpop.f32.mrb[0].mxu0
  %v1017 = vpop.f32.mrb[0].mxu0
  %1018 = vdwg.mxu0
  %1019 = vmatprep.subr.bf16.mxu0 0
  %1020 = vmatpush1.bf16.msra.mxu0 %v197
  %1021 = vmatprep.subr.bf16.mxu0 0
  %1022 = vmatpush1.bf16.msra.mxu0 %v200
  %1023 = vmatprep.subr.bf16.mxu0 0
  %1024 = vmatpush1.bf16.msra.mxu0 %v203
  %1025 = vmatprep.subr.bf16.mxu0 0
  %1026 = vmatpush1.bf16.msra.mxu0 %v206
  %1027 = vmatprep.subr.bf16.mxu0 0
  %1028 = vmatpush1.bf16.msra.mxu0 %v209
  %1029 = vmatprep.subr.bf16.mxu0 0
  %1030 = vmatpush1.bf16.msra.mxu0 %v212
  %1031 = vmatprep.subr.bf16.mxu0 0
  %1032 = vmatpush1.bf16.msra.mxu0 %v215
  %1033 = vmatprep.subr.bf16.mxu0 0
  %1034 = vmatpush1.bf16.msra.mxu0 %v218
  %1035 = vmatprep.subr.bf16.mxu0 0
  %1036 = vmatpush1.bf16.msra.mxu0 0
  %1037 = vmatprep.subr.bf16.mxu0 0
  %1038 = vmatpush1.bf16.msra.mxu0 0
  %1039 = vmatprep.subr.bf16.mxu0 0
  %1040 = vmatpush1.bf16.msra.mxu0 0
  %1041 = vmatprep.subr.bf16.mxu0 0
  %1042 = vmatpush1.bf16.msra.mxu0 0
  %1043 = vmatprep.subr.bf16.mxu0 0
  %1044 = vmatpush1.bf16.msra.mxu0 0
  %1045 = vmatprep.subr.bf16.mxu0 0
  %1046 = vmatpush1.bf16.msra.mxu0 0
  %1047 = vmatprep.subr.bf16.mxu0 0
  %1048 = vmatpush1.bf16.msra.mxu0 0
  %1049 = vmatprep.subr.bf16.mxu0 0
  %1050 = vmatpush1.bf16.msra.mxu0 0
  %1051 = vmatprep.mubr.bf16.mxu0 0
  %1052 = vmatmul.mubr.bf16.gmra.mrb[0].mxu0 %v977
  %v1053 = vpop.f32.mrb[0].mxu0
  %v1054 = vadd.f32 %v111, %v1053
  %v1055 = vpop.f32.mrb[0].mxu0
  %v1056 = vpop.f32.mrb[0].mxu0
  %v1057 = vpop.f32.mrb[0].mxu0
  %1058 = vdwg.mxu0
  %v1059 = vpack.c.bf16 %v961, %v961
  %1060 = vmatprep.subr.bf16.mxu0 %v406
  %1061 = vmatpush1.bf16.msra.mxu0 %v405
  %1062 = vmatprep.subr.bf16.mxu0 %v409
  %1063 = vmatpush1.bf16.msra.mxu0 %v408
  %1064 = vmatprep.subr.bf16.mxu0 %v412
  %1065 = vmatpush1.bf16.msra.mxu0 %v411
  %1066 = vmatprep.subr.bf16.mxu0 %v415
  %1067 = vmatpush1.bf16.msra.mxu0 %v414
  %1068 = vmatprep.subr.bf16.mxu0 %v418
  %1069 = vmatpush1.bf16.msra.mxu0 %v417
  %1070 = vmatprep.subr.bf16.mxu0 %v421
  %1071 = vmatpush1.bf16.msra.mxu0 %v420
  %1072 = vmatprep.subr.bf16.mxu0 %v424
  %1073 = vmatpush1.bf16.msra.mxu0 %v423
  %1074 = vmatprep.subr.bf16.mxu0 %v427
  %1075 = vmatpush1.bf16.msra.mxu0 %v426
  %1076 = vmatprep.subr.bf16.mxu0 0
  %1077 = vmatpush1.bf16.msra.mxu0 0
  %1078 = vmatprep.subr.bf16.mxu0 0
  %1079 = vmatpush1.bf16.msra.mxu0 0
  %1080 = vmatprep.subr.bf16.mxu0 0
  %1081 = vmatpush1.bf16.msra.mxu0 0
  %1082 = vmatprep.subr.bf16.mxu0 0
  %1083 = vmatpush1.bf16.msra.mxu0 0
  %1084 = vmatprep.subr.bf16.mxu0 0
  %1085 = vmatpush1.bf16.msra.mxu0 0
  %1086 = vmatprep.subr.bf16.mxu0 0
  %1087 = vmatpush1.bf16.msra.mxu0 0
  %1088 = vmatprep.subr.bf16.mxu0 0
  %1089 = vmatpush1.bf16.msra.mxu0 0
  %1090 = vmatprep.subr.bf16.mxu0 0
  %1091 = vmatpush1.bf16.msra.mxu0 0
  %1092 = vmatprep.mubr.bf16.mxu0 0
  %1093 = vmatmul.mubr.bf16.gmra.mrb[0].mxu0 %v1059
  %v1094 = vpop.f32.mrb[0].mxu0
  %v1095 = vadd.f32 0.0, %v1094
  %v1096 = vpop.f32.mrb[0].mxu0
  %v1097 = vadd.f32 0.0, %v1096
  %v1098 = vpop.f32.mrb[0].mxu0
  %v1099 = vpop.f32.mrb[0].mxu0
  %1100 = vdwg.mxu0
  %1101 = vmatprep.subr.bf16.mxu0 0
  %1102 = vmatpush1.bf16.msra.mxu0 %v407
  %1103 = vmatprep.subr.bf16.mxu0 0
  %1104 = vmatpush1.bf16.msra.mxu0 %v410
  %1105 = vmatprep.subr.bf16.mxu0 0
  %1106 = vmatpush1.bf16.msra.mxu0 %v413
  %1107 = vmatprep.subr.bf16.mxu0 0
  %1108 = vmatpush1.bf16.msra.mxu0 %v416
  %1109 = vmatprep.subr.bf16.mxu0 0
  %1110 = vmatpush1.bf16.msra.mxu0 %v419
  %1111 = vmatprep.subr.bf16.mxu0 0
  %1112 = vmatpush1.bf16.msra.mxu0 %v422
  %1113 = vmatprep.subr.bf16.mxu0 0
  %1114 = vmatpush1.bf16.msra.mxu0 %v425
  %1115 = vmatprep.subr.bf16.mxu0 0
  %1116 = vmatpush1.bf16.msra.mxu0 %v428
  %1117 = vmatprep.subr.bf16.mxu0 0
  %1118 = vmatpush1.bf16.msra.mxu0 0
  %1119 = vmatprep.subr.bf16.mxu0 0
  %1120 = vmatpush1.bf16.msra.mxu0 0
  %1121 = vmatprep.subr.bf16.mxu0 0
  %1122 = vmatpush1.bf16.msra.mxu0 0
  %1123 = vmatprep.subr.bf16.mxu0 0
  %1124 = vmatpush1.bf16.msra.mxu0 0
  %1125 = vmatprep.subr.bf16.mxu0 0
  %1126 = vmatpush1.bf16.msra.mxu0 0
  %1127 = vmatprep.subr.bf16.mxu0 0
  %1128 = vmatpush1.bf16.msra.mxu0 0
  %1129 = vmatprep.subr.bf16.mxu0 0
  %1130 = vmatpush1.bf16.msra.mxu0 0
  %1131 = vmatprep.subr.bf16.mxu0 0
  %1132 = vmatpush1.bf16.msra.mxu0 0
  %1133 = vmatprep.mubr.bf16.mxu0 0
  %1134 = vmatmul.mubr.bf16.gmra.mrb[0].mxu0 %v1059
  %v1135 = vpop.f32.mrb[0].mxu0
  %v1136 = vadd.f32 0.0, %v1135
  %v1137 = vpop.f32.mrb[0].mxu0
  %v1138 = vpop.f32.mrb[0].mxu0
  %v1139 = vpop.f32.mrb[0].mxu0
  %1140 = vdwg.mxu0
  %v1141 = vadd.f32 %v1013, %v1095
  %v1142 = vxor.u32 %v1141, 2147483648
  %v1143 = vmul.f32 %v1142, 1.442695
  %v1144 = vpow.pop %v1143
  %v1145 = vadd.f32 %v1144, 1.0
  %v1146 = vrcp.pop %v1145
  %v1147 = vmul.f32 1.0, %v1146
  %v1148 = vadd.f32 %v1015, %v1097
  %v1149 = vxor.u32 %v1148, 2147483648
  %v1150 = vmul.f32 %v1149, 1.442695
  %v1151 = vpow.pop %v1150
  %v1152 = vadd.f32 %v1151, 1.0
  %v1153 = vrcp.pop %v1152
  %v1154 = vmul.f32 1.0, %v1153
  %v1155 = vadd.f32 %v1136, %v552
  %v1156 = vmul.f32 %v1147, %v1155
  %v1157 = vadd.f32 %v1054, %v1156
  %v1158 = vtanh.pop %v1157
  %v1159 = vsub.f32 1.0, %v1154
  %v1160 = vmul.f32 %v1159, %v1158
  %v1161 = vmul.f32 %v1154, %v961
  %v1162 = vadd.f32 %v1160, %v1161
  %s1163 = sadd.s32 %s96, 3
  %v1164 = vstv %s1163
  %vm1165 = vcmp.lt.s32.totalorder %v1164, %v95
  %v1166 = vsel %vm1165, 1, 0
  %v1167 = vcvt.s32.f32 %v1166
  %1169 = vset.pattern.permute.xlu0 0
  %1170 = vperm.xlu0 %1169, %v1167
  %v1171 = vpop.permute.xlu0 %1170
  %v1173 = vmul.f32 %v1162, %v1171
  %v1174 = vpack.c.bf16 %v1173, %v1173
  %s1175 = scalar_lea.vmem %s6, 12
  %1176 = vst [vmem:[%s1175] sm:$0xf] %v1174
  %s1177 = scalar_lea.vmem %s0, 16
  %v1178 = vld [vmem:[%s1177] sm:$0xf]
  %1179 = vmatprep.subr.bf16.mxu0 %v196
  %1180 = vmatpush1.bf16.msra.mxu0 %v195
  %1181 = vmatprep.subr.bf16.mxu0 %v199
  %1182 = vmatpush1.bf16.msra.mxu0 %v198
  %1183 = vmatprep.subr.bf16.mxu0 %v202
  %1184 = vmatpush1.bf16.msra.mxu0 %v201
  %1185 = vmatprep.subr.bf16.mxu0 %v205
  %1186 = vmatpush1.bf16.msra.mxu0 %v204
  %1187 = vmatprep.subr.bf16.mxu0 %v208
  %1188 = vmatpush1.bf16.msra.mxu0 %v207
  %1189 = vmatprep.subr.bf16.mxu0 %v211
  %1190 = vmatpush1.bf16.msra.mxu0 %v210
  %1191 = vmatprep.subr.bf16.mxu0 %v214
  %1192 = vmatpush1.bf16.msra.mxu0 %v213
  %1193 = vmatprep.subr.bf16.mxu0 %v217
  %1194 = vmatpush1.bf16.msra.mxu0 %v216
  %1195 = vmatprep.subr.bf16.mxu0 0
  %1196 = vmatpush1.bf16.msra.mxu0 0
  %1197 = vmatprep.subr.bf16.mxu0 0
  %1198 = vmatpush1.bf16.msra.mxu0 0
  %1199 = vmatprep.subr.bf16.mxu0 0
  %1200 = vmatpush1.bf16.msra.mxu0 0
  %1201 = vmatprep.subr.bf16.mxu0 0
  %1202 = vmatpush1.bf16.msra.mxu0 0
  %1203 = vmatprep.subr.bf16.mxu0 0
  %1204 = vmatpush1.bf16.msra.mxu0 0
  %1205 = vmatprep.subr.bf16.mxu0 0
  %1206 = vmatpush1.bf16.msra.mxu0 0
  %1207 = vmatprep.subr.bf16.mxu0 0
  %1208 = vmatpush1.bf16.msra.mxu0 0
  %1209 = vmatprep.subr.bf16.mxu0 0
  %1210 = vmatpush1.bf16.msra.mxu0 0
  %1211 = vmatprep.mubr.bf16.mxu0 0
  %1212 = vmatmul.mubr.bf16.gmra.mrb[0].mxu0 %v1178
  %v1213 = vpop.f32.mrb[0].mxu0
  %v1214 = vadd.f32 %v103, %v1213
  %v1215 = vpop.f32.mrb[0].mxu0
  %v1216 = vadd.f32 %v107, %v1215
  %v1217 = vpop.f32.mrb[0].mxu0
  %v1218 = vpop.f32.mrb[0].mxu0
  %1219 = vdwg.mxu0
  %1220 = vmatprep.subr.bf16.mxu0 0
  %1221 = vmatpush1.bf16.msra.mxu0 %v197
  %1222 = vmatprep.subr.bf16.mxu0 0
  %1223 = vmatpush1.bf16.msra.mxu0 %v200
  %1224 = vmatprep.subr.bf16.mxu0 0
  %1225 = vmatpush1.bf16.msra.mxu0 %v203
  %1226 = vmatprep.subr.bf16.mxu0 0
  %1227 = vmatpush1.bf16.msra.mxu0 %v206
  %1228 = vmatprep.subr.bf16.mxu0 0
  %1229 = vmatpush1.bf16.msra.mxu0 %v209
  %1230 = vmatprep.subr.bf16.mxu0 0
  %1231 = vmatpush1.bf16.msra.mxu0 %v212
  %1232 = vmatprep.subr.bf16.mxu0 0
  %1233 = vmatpush1.bf16.msra.mxu0 %v215
  %1234 = vmatprep.subr.bf16.mxu0 0
  %1235 = vmatpush1.bf16.msra.mxu0 %v218
  %1236 = vmatprep.subr.bf16.mxu0 0
  %1237 = vmatpush1.bf16.msra.mxu0 0
  %1238 = vmatprep.subr.bf16.mxu0 0
  %1239 = vmatpush1.bf16.msra.mxu0 0
  %1240 = vmatprep.subr.bf16.mxu0 0
  %1241 = vmatpush1.bf16.msra.mxu0 0
  %1242 = vmatprep.subr.bf16.mxu0 0
  %1243 = vmatpush1.bf16.msra.mxu0 0
  %1244 = vmatprep.subr.bf16.mxu0 0
  %1245 = vmatpush1.bf16.msra.mxu0 0
  %1246 = vmatprep.subr.bf16.mxu0 0
  %1247 = vmatpush1.bf16.msra.mxu0 0
  %1248 = vmatprep.subr.bf16.mxu0 0
  %1249 = vmatpush1.bf16.msra.mxu0 0
  %1250 = vmatprep.subr.bf16.mxu0 0
  %1251 = vmatpush1.bf16.msra.mxu0 0
  %1252 = vmatprep.mubr.bf16.mxu0 0
  %1253 = vmatmul.mubr.bf16.gmra.mrb[0].mxu0 %v1178
  %v1254 = vpop.f32.mrb[0].mxu0
  %v1255 = vadd.f32 %v111, %v1254
  %v1256 = vpop.f32.mrb[0].mxu0
  %v1257 = vpop.f32.mrb[0].mxu0
  %v1258 = vpop.f32.mrb[0].mxu0
  %1259 = vdwg.mxu0
  %v1260 = vpack.c.bf16 %v1162, %v1162
  %1261 = vmatprep.subr.bf16.mxu0 %v406
  %1262 = vmatpush1.bf16.msra.mxu0 %v405
  %1263 = vmatprep.subr.bf16.mxu0 %v409
  %1264 = vmatpush1.bf16.msra.mxu0 %v408
  %1265 = vmatprep.subr.bf16.mxu0 %v412
  %1266 = vmatpush1.bf16.msra.mxu0 %v411
  %1267 = vmatprep.subr.bf16.mxu0 %v415
  %1268 = vmatpush1.bf16.msra.mxu0 %v414
  %1269 = vmatprep.subr.bf16.mxu0 %v418
  %1270 = vmatpush1.bf16.msra.mxu0 %v417
  %1271 = vmatprep.subr.bf16.mxu0 %v421
  %1272 = vmatpush1.bf16.msra.mxu0 %v420
  %1273 = vmatprep.subr.bf16.mxu0 %v424
  %1274 = vmatpush1.bf16.msra.mxu0 %v423
  %1275 = vmatprep.subr.bf16.mxu0 %v427
  %1276 = vmatpush1.bf16.msra.mxu0 %v426
  %1277 = vmatprep.subr.bf16.mxu0 0
  %1278 = vmatpush1.bf16.msra.mxu0 0
  %1279 = vmatprep.subr.bf16.mxu0 0
  %1280 = vmatpush1.bf16.msra.mxu0 0
  %1281 = vmatprep.subr.bf16.mxu0 0
  %1282 = vmatpush1.bf16.msra.mxu0 0
  %1283 = vmatprep.subr.bf16.mxu0 0
  %1284 = vmatpush1.bf16.msra.mxu0 0
  %1285 = vmatprep.subr.bf16.mxu0 0
  %1286 = vmatpush1.bf16.msra.mxu0 0
  %1287 = vmatprep.subr.bf16.mxu0 0
  %1288 = vmatpush1.bf16.msra.mxu0 0
  %1289 = vmatprep.subr.bf16.mxu0 0
  %1290 = vmatpush1.bf16.msra.mxu0 0
  %1291 = vmatprep.subr.bf16.mxu0 0
  %1292 = vmatpush1.bf16.msra.mxu0 0
  %1293 = vmatprep.mubr.bf16.mxu0 0
  %1294 = vmatmul.mubr.bf16.gmra.mrb[0].mxu0 %v1260
  %v1295 = vpop.f32.mrb[0].mxu0
  %v1296 = vadd.f32 0.0, %v1295
  %v1297 = vpop.f32.mrb[0].mxu0
  %v1298 = vadd.f32 0.0, %v1297
  %v1299 = vpop.f32.mrb[0].mxu0
  %v1300 = vpop.f32.mrb[0].mxu0
  %1301 = vdwg.mxu0
  %1302 = vmatprep.subr.bf16.mxu0 0
  %1303 = vmatpush1.bf16.msra.mxu0 %v407
  %1304 = vmatprep.subr.bf16.mxu0 0
  %1305 = vmatpush1.bf16.msra.mxu0 %v410
  %1306 = vmatprep.subr.bf16.mxu0 0
  %1307 = vmatpush1.bf16.msra.mxu0 %v413
  %1308 = vmatprep.subr.bf16.mxu0 0
  %1309 = vmatpush1.bf16.msra.mxu0 %v416
  %1310 = vmatprep.subr.bf16.mxu0 0
  %1311 = vmatpush1.bf16.msra.mxu0 %v419
  %1312 = vmatprep.subr.bf16.mxu0 0
  %1313 = vmatpush1.bf16.msra.mxu0 %v422
  %1314 = vmatprep.subr.bf16.mxu0 0
  %1315 = vmatpush1.bf16.msra.mxu0 %v425
  %1316 = vmatprep.subr.bf16.mxu0 0
  %1317 = vmatpush1.bf16.msra.mxu0 %v428
  %1318 = vmatprep.subr.bf16.mxu0 0
  %1319 = vmatpush1.bf16.msra.mxu0 0
  %1320 = vmatprep.subr.bf16.mxu0 0
  %1321 = vmatpush1.bf16.msra.mxu0 0
  %1322 = vmatprep.subr.bf16.mxu0 0
  %1323 = vmatpush1.bf16.msra.mxu0 0
  %1324 = vmatprep.subr.bf16.mxu0 0
  %1325 = vmatpush1.bf16.msra.mxu0 0
  %1326 = vmatprep.subr.bf16.mxu0 0
  %1327 = vmatpush1.bf16.msra.mxu0 0
  %1328 = vmatprep.subr.bf16.mxu0 0
  %1329 = vmatpush1.bf16.msra.mxu0 0
  %1330 = vmatprep.subr.bf16.mxu0 0
  %1331 = vmatpush1.bf16.msra.mxu0 0
  %1332 = vmatprep.subr.bf16.mxu0 0
  %1333 = vmatpush1.bf16.msra.mxu0 0
  %1334 = vmatprep.mubr.bf16.mxu0 0
  %1335 = vmatmul.mubr.bf16.gmra.mrb[0].mxu0 %v1260
  %v1336 = vpop.f32.mrb[0].mxu0
  %v1337 = vadd.f32 0.0, %v1336
  %v1338 = vpop.f32.mrb[0].mxu0
  %v1339 = vpop.f32.mrb[0].mxu0
  %v1340 = vpop.f32.mrb[0].mxu0
  %1341 = vdwg.mxu0
  %v1342 = vadd.f32 %v1214, %v1296
  %v1343 = vxor.u32 %v1342, 2147483648
  %v1344 = vmul.f32 %v1343, 1.442695
  %v1345 = vpow.pop %v1344
  %v1346 = vadd.f32 %v1345, 1.0
  %v1347 = vrcp.pop %v1346
  %v1348 = vmul.f32 1.0, %v1347
  %v1349 = vadd.f32 %v1216, %v1298
  %v1350 = vxor.u32 %v1349, 2147483648
  %v1351 = vmul.f32 %v1350, 1.442695
  %v1352 = vpow.pop %v1351
  %v1353 = vadd.f32 %v1352, 1.0
  %v1354 = vrcp.pop %v1353
  %v1355 = vmul.f32 1.0, %v1354
  %v1356 = vadd.f32 %v1337, %v552
  %v1357 = vmul.f32 %v1348, %v1356
  %v1358 = vadd.f32 %v1255, %v1357
  %v1359 = vtanh.pop %v1358
  %v1360 = vsub.f32 1.0, %v1355
  %v1361 = vmul.f32 %v1360, %v1359
  %v1362 = vmul.f32 %v1355, %v1162
  %v1363 = vadd.f32 %v1361, %v1362
  %s1364 = sadd.s32 %s96, 4
  %v1365 = vstv %s1364
  %vm1366 = vcmp.lt.s32.totalorder %v1365, %v95
  %v1367 = vsel %vm1366, 1, 0
  %v1368 = vcvt.s32.f32 %v1367
  %1370 = vset.pattern.permute.xlu0 0
  %1371 = vperm.xlu0 %1370, %v1368
  %v1372 = vpop.permute.xlu0 %1371
  %v1374 = vmul.f32 %v1363, %v1372
  %v1375 = vpack.c.bf16 %v1374, %v1374
  %s1376 = scalar_lea.vmem %s6, 16
  %1377 = vst [vmem:[%s1376] sm:$0xf] %v1375
  %s1378 = scalar_lea.vmem %s0, 20
  %v1379 = vld [vmem:[%s1378] sm:$0xf]
  %1380 = vmatprep.subr.bf16.mxu0 %v196
  %1381 = vmatpush1.bf16.msra.mxu0 %v195
  %1382 = vmatprep.subr.bf16.mxu0 %v199
  %1383 = vmatpush1.bf16.msra.mxu0 %v198
  %1384 = vmatprep.subr.bf16.mxu0 %v202
  %1385 = vmatpush1.bf16.msra.mxu0 %v201
  %1386 = vmatprep.subr.bf16.mxu0 %v205
  %1387 = vmatpush1.bf16.msra.mxu0 %v204
  %1388 = vmatprep.subr.bf16.mxu0 %v208
  %1389 = vmatpush1.bf16.msra.mxu0 %v207
  %1390 = vmatprep.subr.bf16.mxu0 %v211
  %1391 = vmatpush1.bf16.msra.mxu0 %v210
  %1392 = vmatprep.subr.bf16.mxu0 %v214
  %1393 = vmatpush1.bf16.msra.mxu0 %v213
  %1394 = vmatprep.subr.bf16.mxu0 %v217
  %1395 = vmatpush1.bf16.msra.mxu0 %v216
  %1396 = vmatprep.subr.bf16.mxu0 0
  %1397 = vmatpush1.bf16.msra.mxu0 0
  %1398 = vmatprep.subr.bf16.mxu0 0
  %1399 = vmatpush1.bf16.msra.mxu0 0
  %1400 = vmatprep.subr.bf16.mxu0 0
  %1401 = vmatpush1.bf16.msra.mxu0 0
  %1402 = vmatprep.subr.bf16.mxu0 0
  %1403 = vmatpush1.bf16.msra.mxu0 0
  %1404 = vmatprep.subr.bf16.mxu0 0
  %1405 = vmatpush1.bf16.msra.mxu0 0
  %1406 = vmatprep.subr.bf16.mxu0 0
  %1407 = vmatpush1.bf16.msra.mxu0 0
  %1408 = vmatprep.subr.bf16.mxu0 0
  %1409 = vmatpush1.bf16.msra.mxu0 0
  %1410 = vmatprep.subr.bf16.mxu0 0
  %1411 = vmatpush1.bf16.msra.mxu0 0
  %1412 = vmatprep.mubr.bf16.mxu0 0
  %1413 = vmatmul.mubr.bf16.gmra.mrb[0].mxu0 %v1379
  %v1414 = vpop.f32.mrb[0].mxu0
  %v1415 = vadd.f32 %v103, %v1414
  %v1416 = vpop.f32.mrb[0].mxu0
  %v1417 = vadd.f32 %v107, %v1416
  %v1418 = vpop.f32.mrb[0].mxu0
  %v1419 = vpop.f32.mrb[0].mxu0
  %1420 = vdwg.mxu0
  %1421 = vmatprep.subr.bf16.mxu0 0
  %1422 = vmatpush1.bf16.msra.mxu0 %v197
  %1423 = vmatprep.subr.bf16.mxu0 0
  %1424 = vmatpush1.bf16.msra.mxu0 %v200
  %1425 = vmatprep.subr.bf16.mxu0 0
  %1426 = vmatpush1.bf16.msra.mxu0 %v203
  %1427 = vmatprep.subr.bf16.mxu0 0
  %1428 = vmatpush1.bf16.msra.mxu0 %v206
  %1429 = vmatprep.subr.bf16.mxu0 0
  %1430 = vmatpush1.bf16.msra.mxu0 %v209
  %1431 = vmatprep.subr.bf16.mxu0 0
  %1432 = vmatpush1.bf16.msra.mxu0 %v212
  %1433 = vmatprep.subr.bf16.mxu0 0
  %1434 = vmatpush1.bf16.msra.mxu0 %v215
  %1435 = vmatprep.subr.bf16.mxu0 0
  %1436 = vmatpush1.bf16.msra.mxu0 %v218
  %1437 = vmatprep.subr.bf16.mxu0 0
  %1438 = vmatpush1.bf16.msra.mxu0 0
  %1439 = vmatprep.subr.bf16.mxu0 0
  %1440 = vmatpush1.bf16.msra.mxu0 0
  %1441 = vmatprep.subr.bf16.mxu0 0
  %1442 = vmatpush1.bf16.msra.mxu0 0
  %1443 = vmatprep.subr.bf16.mxu0 0
  %1444 = vmatpush1.bf16.msra.mxu0 0
  %1445 = vmatprep.subr.bf16.mxu0 0
  %1446 = vmatpush1.bf16.msra.mxu0 0
  %1447 = vmatprep.subr.bf16.mxu0 0
  %1448 = vmatpush1.bf16.msra.mxu0 0
  %1449 = vmatprep.subr.bf16.mxu0 0
  %1450 = vmatpush1.bf16.msra.mxu0 0
  %1451 = vmatprep.subr.bf16.mxu0 0
  %1452 = vmatpush1.bf16.msra.mxu0 0
  %1453 = vmatprep.mubr.bf16.mxu0 0
  %1454 = vmatmul.mubr.bf16.gmra.mrb[0].mxu0 %v1379
  %v1455 = vpop.f32.mrb[0].mxu0
  %v1456 = vadd.f32 %v111, %v1455
  %v1457 = vpop.f32.mrb[0].mxu0
  %v1458 = vpop.f32.mrb[0].mxu0
  %v1459 = vpop.f32.mrb[0].mxu0
  %1460 = vdwg.mxu0
  %v1461 = vpack.c.bf16 %v1363, %v1363
  %1462 = vmatprep.subr.bf16.mxu0 %v406
  %1463 = vmatpush1.bf16.msra.mxu0 %v405
  %1464 = vmatprep.subr.bf16.mxu0 %v409
  %1465 = vmatpush1.bf16.msra.mxu0 %v408
  %1466 = vmatprep.subr.bf16.mxu0 %v412
  %1467 = vmatpush1.bf16.msra.mxu0 %v411
  %1468 = vmatprep.subr.bf16.mxu0 %v415
  %1469 = vmatpush1.bf16.msra.mxu0 %v414
  %1470 = vmatprep.subr.bf16.mxu0 %v418
  %1471 = vmatpush1.bf16.msra.mxu0 %v417
  %1472 = vmatprep.subr.bf16.mxu0 %v421
  %1473 = vmatpush1.bf16.msra.mxu0 %v420
  %1474 = vmatprep.subr.bf16.mxu0 %v424
  %1475 = vmatpush1.bf16.msra.mxu0 %v423
  %1476 = vmatprep.subr.bf16.mxu0 %v427
  %1477 = vmatpush1.bf16.msra.mxu0 %v426
  %1478 = vmatprep.subr.bf16.mxu0 0
  %1479 = vmatpush1.bf16.msra.mxu0 0
  %1480 = vmatprep.subr.bf16.mxu0 0
  %1481 = vmatpush1.bf16.msra.mxu0 0
  %1482 = vmatprep.subr.bf16.mxu0 0
  %1483 = vmatpush1.bf16.msra.mxu0 0
  %1484 = vmatprep.subr.bf16.mxu0 0
  %1485 = vmatpush1.bf16.msra.mxu0 0
  %1486 = vmatprep.subr.bf16.mxu0 0
  %1487 = vmatpush1.bf16.msra.mxu0 0
  %1488 = vmatprep.subr.bf16.mxu0 0
  %1489 = vmatpush1.bf16.msra.mxu0 0
  %1490 = vmatprep.subr.bf16.mxu0 0
  %1491 = vmatpush1.bf16.msra.mxu0 0
  %1492 = vmatprep.subr.bf16.mxu0 0
  %1493 = vmatpush1.bf16.msra.mxu0 0
  %1494 = vmatprep.mubr.bf16.mxu0 0
  %1495 = vmatmul.mubr.bf16.gmra.mrb[0].mxu0 %v1461
  %v1496 = vpop.f32.mrb[0].mxu0
  %v1497 = vadd.f32 0.0, %v1496
  %v1498 = vpop.f32.mrb[0].mxu0
  %v1499 = vadd.f32 0.0, %v1498
  %v1500 = vpop.f32.mrb[0].mxu0
  %v1501 = vpop.f32.mrb[0].mxu0
  %1502 = vdwg.mxu0
  %1503 = vmatprep.subr.bf16.mxu0 0
  %1504 = vmatpush1.bf16.msra.mxu0 %v407
  %1505 = vmatprep.subr.bf16.mxu0 0
  %1506 = vmatpush1.bf16.msra.mxu0 %v410
  %1507 = vmatprep.subr.bf16.mxu0 0
  %1508 = vmatpush1.bf16.msra.mxu0 %v413
  %1509 = vmatprep.subr.bf16.mxu0 0
  %1510 = vmatpush1.bf16.msra.mxu0 %v416
  %1511 = vmatprep.subr.bf16.mxu0 0
  %1512 = vmatpush1.bf16.msra.mxu0 %v419
  %1513 = vmatprep.subr.bf16.mxu0 0
  %1514 = vmatpush1.bf16.msra.mxu0 %v422
  %1515 = vmatprep.subr.bf16.mxu0 0
  %1516 = vmatpush1.bf16.msra.mxu0 %v425
  %1517 = vmatprep.subr.bf16.mxu0 0
  %1518 = vmatpush1.bf16.msra.mxu0 %v428
  %1519 = vmatprep.subr.bf16.mxu0 0
  %1520 = vmatpush1.bf16.msra.mxu0 0
  %1521 = vmatprep.subr.bf16.mxu0 0
  %1522 = vmatpush1.bf16.msra.mxu0 0
  %1523 = vmatprep.subr.bf16.mxu0 0
  %1524 = vmatpush1.bf16.msra.mxu0 0
  %1525 = vmatprep.subr.bf16.mxu0 0
  %1526 = vmatpush1.bf16.msra.mxu0 0
  %1527 = vmatprep.subr.bf16.mxu0 0
  %1528 = vmatpush1.bf16.msra.mxu0 0
  %1529 = vmatprep.subr.bf16.mxu0 0
  %1530 = vmatpush1.bf16.msra.mxu0 0
  %1531 = vmatprep.subr.bf16.mxu0 0
  %1532 = vmatpush1.bf16.msra.mxu0 0
  %1533 = vmatprep.subr.bf16.mxu0 0
  %1534 = vmatpush1.bf16.msra.mxu0 0
  %1535 = vmatprep.mubr.bf16.mxu0 0
  %1536 = vmatmul.mubr.bf16.gmra.mrb[0].mxu0 %v1461
  %v1537 = vpop.f32.mrb[0].mxu0
  %v1538 = vadd.f32 0.0, %v1537
  %v1539 = vpop.f32.mrb[0].mxu0
  %v1540 = vpop.f32.mrb[0].mxu0
  %v1541 = vpop.f32.mrb[0].mxu0
  %1542 = vdwg.mxu0
  %v1543 = vadd.f32 %v1415, %v1497
  %v1544 = vxor.u32 %v1543, 2147483648
  %v1545 = vmul.f32 %v1544, 1.442695
  %v1546 = vpow.pop %v1545
  %v1547 = vadd.f32 %v1546, 1.0
  %v1548 = vrcp.pop %v1547
  %v1549 = vmul.f32 1.0, %v1548
  %v1550 = vadd.f32 %v1417, %v1499
  %v1551 = vxor.u32 %v1550, 2147483648
  %v1552 = vmul.f32 %v1551, 1.442695
  %v1553 = vpow.pop %v1552
  %v1554 = vadd.f32 %v1553, 1.0
  %v1555 = vrcp.pop %v1554
  %v1556 = vmul.f32 1.0, %v1555
  %v1557 = vadd.f32 %v1538, %v552
  %v1558 = vmul.f32 %v1549, %v1557
  %v1559 = vadd.f32 %v1456, %v1558
  %v1560 = vtanh.pop %v1559
  %v1561 = vsub.f32 1.0, %v1556
  %v1562 = vmul.f32 %v1561, %v1560
  %v1563 = vmul.f32 %v1556, %v1363
  %v1564 = vadd.f32 %v1562, %v1563
  %s1565 = sadd.s32 %s96, 5
  %v1566 = vstv %s1565
  %vm1567 = vcmp.lt.s32.totalorder %v1566, %v95
  %v1568 = vsel %vm1567, 1, 0
  %v1569 = vcvt.s32.f32 %v1568
  %1571 = vset.pattern.permute.xlu0 0
  %1572 = vperm.xlu0 %1571, %v1569
  %v1573 = vpop.permute.xlu0 %1572
  %v1575 = vmul.f32 %v1564, %v1573
  %v1576 = vpack.c.bf16 %v1575, %v1575
  %s1577 = scalar_lea.vmem %s6, 20
  %1578 = vst [vmem:[%s1577] sm:$0xf] %v1576
  %s1579 = scalar_lea.vmem %s0, 24
  %v1580 = vld [vmem:[%s1579] sm:$0xf]
  %1581 = vmatprep.subr.bf16.mxu0 %v196
  %1582 = vmatpush1.bf16.msra.mxu0 %v195
  %1583 = vmatprep.subr.bf16.mxu0 %v199
  %1584 = vmatpush1.bf16.msra.mxu0 %v198
  %1585 = vmatprep.subr.bf16.mxu0 %v202
  %1586 = vmatpush1.bf16.msra.mxu0 %v201
  %1587 = vmatprep.subr.bf16.mxu0 %v205
  %1588 = vmatpush1.bf16.msra.mxu0 %v204
  %1589 = vmatprep.subr.bf16.mxu0 %v208
  %1590 = vmatpush1.bf16.msra.mxu0 %v207
  %1591 = vmatprep.subr.bf16.mxu0 %v211
  %1592 = vmatpush1.bf16.msra.mxu0 %v210
  %1593 = vmatprep.subr.bf16.mxu0 %v214
  %1594 = vmatpush1.bf16.msra.mxu0 %v213
  %1595 = vmatprep.subr.bf16.mxu0 %v217
  %1596 = vmatpush1.bf16.msra.mxu0 %v216
  %1597 = vmatprep.subr.bf16.mxu0 0
  %1598 = vmatpush1.bf16.msra.mxu0 0
  %1599 = vmatprep.subr.bf16.mxu0 0
  %1600 = vmatpush1.bf16.msra.mxu0 0
  %1601 = vmatprep.subr.bf16.mxu0 0
  %1602 = vmatpush1.bf16.msra.mxu0 0
  %1603 = vmatprep.subr.bf16.mxu0 0
  %1604 = vmatpush1.bf16.msra.mxu0 0
  %1605 = vmatprep.subr.bf16.mxu0 0
  %1606 = vmatpush1.bf16.msra.mxu0 0
  %1607 = vmatprep.subr.bf16.mxu0 0
  %1608 = vmatpush1.bf16.msra.mxu0 0
  %1609 = vmatprep.subr.bf16.mxu0 0
  %1610 = vmatpush1.bf16.msra.mxu0 0
  %1611 = vmatprep.subr.bf16.mxu0 0
  %1612 = vmatpush1.bf16.msra.mxu0 0
  %1613 = vmatprep.mubr.bf16.mxu0 0
  %1614 = vmatmul.mubr.bf16.gmra.mrb[0].mxu0 %v1580
  %v1615 = vpop.f32.mrb[0].mxu0
  %v1616 = vadd.f32 %v103, %v1615
  %v1617 = vpop.f32.mrb[0].mxu0
  %v1618 = vadd.f32 %v107, %v1617
  %v1619 = vpop.f32.mrb[0].mxu0
  %v1620 = vpop.f32.mrb[0].mxu0
  %1621 = vdwg.mxu0
  %1622 = vmatprep.subr.bf16.mxu0 0
  %1623 = vmatpush1.bf16.msra.mxu0 %v197
  %1624 = vmatprep.subr.bf16.mxu0 0
  %1625 = vmatpush1.bf16.msra.mxu0 %v200
  %1626 = vmatprep.subr.bf16.mxu0 0
  %1627 = vmatpush1.bf16.msra.mxu0 %v203
  %1628 = vmatprep.subr.bf16.mxu0 0
  %1629 = vmatpush1.bf16.msra.mxu0 %v206
  %1630 = vmatprep.subr.bf16.mxu0 0
  %1631 = vmatpush1.bf16.msra.mxu0 %v209
  %1632 = vmatprep.subr.bf16.mxu0 0
  %1633 = vmatpush1.bf16.msra.mxu0 %v212
  %1634 = vmatprep.subr.bf16.mxu0 0
  %1635 = vmatpush1.bf16.msra.mxu0 %v215
  %1636 = vmatprep.subr.bf16.mxu0 0
  %1637 = vmatpush1.bf16.msra.mxu0 %v218
  %1638 = vmatprep.subr.bf16.mxu0 0
  %1639 = vmatpush1.bf16.msra.mxu0 0
  %1640 = vmatprep.subr.bf16.mxu0 0
  %1641 = vmatpush1.bf16.msra.mxu0 0
  %1642 = vmatprep.subr.bf16.mxu0 0
  %1643 = vmatpush1.bf16.msra.mxu0 0
  %1644 = vmatprep.subr.bf16.mxu0 0
  %1645 = vmatpush1.bf16.msra.mxu0 0
  %1646 = vmatprep.subr.bf16.mxu0 0
  %1647 = vmatpush1.bf16.msra.mxu0 0
  %1648 = vmatprep.subr.bf16.mxu0 0
  %1649 = vmatpush1.bf16.msra.mxu0 0
  %1650 = vmatprep.subr.bf16.mxu0 0
  %1651 = vmatpush1.bf16.msra.mxu0 0
  %1652 = vmatprep.subr.bf16.mxu0 0
  %1653 = vmatpush1.bf16.msra.mxu0 0
  %1654 = vmatprep.mubr.bf16.mxu0 0
  %1655 = vmatmul.mubr.bf16.gmra.mrb[0].mxu0 %v1580
  %v1656 = vpop.f32.mrb[0].mxu0
  %v1657 = vadd.f32 %v111, %v1656
  %v1658 = vpop.f32.mrb[0].mxu0
  %v1659 = vpop.f32.mrb[0].mxu0
  %v1660 = vpop.f32.mrb[0].mxu0
  %1661 = vdwg.mxu0
  %v1662 = vpack.c.bf16 %v1564, %v1564
  %1663 = vmatprep.subr.bf16.mxu0 %v406
  %1664 = vmatpush1.bf16.msra.mxu0 %v405
  %1665 = vmatprep.subr.bf16.mxu0 %v409
  %1666 = vmatpush1.bf16.msra.mxu0 %v408
  %1667 = vmatprep.subr.bf16.mxu0 %v412
  %1668 = vmatpush1.bf16.msra.mxu0 %v411
  %1669 = vmatprep.subr.bf16.mxu0 %v415
  %1670 = vmatpush1.bf16.msra.mxu0 %v414
  %1671 = vmatprep.subr.bf16.mxu0 %v418
  %1672 = vmatpush1.bf16.msra.mxu0 %v417
  %1673 = vmatprep.subr.bf16.mxu0 %v421
  %1674 = vmatpush1.bf16.msra.mxu0 %v420
  %1675 = vmatprep.subr.bf16.mxu0 %v424
  %1676 = vmatpush1.bf16.msra.mxu0 %v423
  %1677 = vmatprep.subr.bf16.mxu0 %v427
  %1678 = vmatpush1.bf16.msra.mxu0 %v426
  %1679 = vmatprep.subr.bf16.mxu0 0
  %1680 = vmatpush1.bf16.msra.mxu0 0
  %1681 = vmatprep.subr.bf16.mxu0 0
  %1682 = vmatpush1.bf16.msra.mxu0 0
  %1683 = vmatprep.subr.bf16.mxu0 0
  %1684 = vmatpush1.bf16.msra.mxu0 0
  %1685 = vmatprep.subr.bf16.mxu0 0
  %1686 = vmatpush1.bf16.msra.mxu0 0
  %1687 = vmatprep.subr.bf16.mxu0 0
  %1688 = vmatpush1.bf16.msra.mxu0 0
  %1689 = vmatprep.subr.bf16.mxu0 0
  %1690 = vmatpush1.bf16.msra.mxu0 0
  %1691 = vmatprep.subr.bf16.mxu0 0
  %1692 = vmatpush1.bf16.msra.mxu0 0
  %1693 = vmatprep.subr.bf16.mxu0 0
  %1694 = vmatpush1.bf16.msra.mxu0 0
  %1695 = vmatprep.mubr.bf16.mxu0 0
  %1696 = vmatmul.mubr.bf16.gmra.mrb[0].mxu0 %v1662
  %v1697 = vpop.f32.mrb[0].mxu0
  %v1698 = vadd.f32 0.0, %v1697
  %v1699 = vpop.f32.mrb[0].mxu0
  %v1700 = vadd.f32 0.0, %v1699
  %v1701 = vpop.f32.mrb[0].mxu0
  %v1702 = vpop.f32.mrb[0].mxu0
  %1703 = vdwg.mxu0
  %1704 = vmatprep.subr.bf16.mxu0 0
  %1705 = vmatpush1.bf16.msra.mxu0 %v407
  %1706 = vmatprep.subr.bf16.mxu0 0
  %1707 = vmatpush1.bf16.msra.mxu0 %v410
  %1708 = vmatprep.subr.bf16.mxu0 0
  %1709 = vmatpush1.bf16.msra.mxu0 %v413
  %1710 = vmatprep.subr.bf16.mxu0 0
  %1711 = vmatpush1.bf16.msra.mxu0 %v416
  %1712 = vmatprep.subr.bf16.mxu0 0
  %1713 = vmatpush1.bf16.msra.mxu0 %v419
  %1714 = vmatprep.subr.bf16.mxu0 0
  %1715 = vmatpush1.bf16.msra.mxu0 %v422
  %1716 = vmatprep.subr.bf16.mxu0 0
  %1717 = vmatpush1.bf16.msra.mxu0 %v425
  %1718 = vmatprep.subr.bf16.mxu0 0
  %1719 = vmatpush1.bf16.msra.mxu0 %v428
  %1720 = vmatprep.subr.bf16.mxu0 0
  %1721 = vmatpush1.bf16.msra.mxu0 0
  %1722 = vmatprep.subr.bf16.mxu0 0
  %1723 = vmatpush1.bf16.msra.mxu0 0
  %1724 = vmatprep.subr.bf16.mxu0 0
  %1725 = vmatpush1.bf16.msra.mxu0 0
  %1726 = vmatprep.subr.bf16.mxu0 0
  %1727 = vmatpush1.bf16.msra.mxu0 0
  %1728 = vmatprep.subr.bf16.mxu0 0
  %1729 = vmatpush1.bf16.msra.mxu0 0
  %1730 = vmatprep.subr.bf16.mxu0 0
  %1731 = vmatpush1.bf16.msra.mxu0 0
  %1732 = vmatprep.subr.bf16.mxu0 0
  %1733 = vmatpush1.bf16.msra.mxu0 0
  %1734 = vmatprep.subr.bf16.mxu0 0
  %1735 = vmatpush1.bf16.msra.mxu0 0
  %1736 = vmatprep.mubr.bf16.mxu0 0
  %1737 = vmatmul.mubr.bf16.gmra.mrb[0].mxu0 %v1662
  %v1738 = vpop.f32.mrb[0].mxu0
  %v1739 = vadd.f32 0.0, %v1738
  %v1740 = vpop.f32.mrb[0].mxu0
  %v1741 = vpop.f32.mrb[0].mxu0
  %v1742 = vpop.f32.mrb[0].mxu0
  %1743 = vdwg.mxu0
  %v1744 = vadd.f32 %v1616, %v1698
  %v1745 = vxor.u32 %v1744, 2147483648
  %v1746 = vmul.f32 %v1745, 1.442695
  %v1747 = vpow.pop %v1746
  %v1748 = vadd.f32 %v1747, 1.0
  %v1749 = vrcp.pop %v1748
  %v1750 = vmul.f32 1.0, %v1749
  %v1751 = vadd.f32 %v1618, %v1700
  %v1752 = vxor.u32 %v1751, 2147483648
  %v1753 = vmul.f32 %v1752, 1.442695
  %v1754 = vpow.pop %v1753
  %v1755 = vadd.f32 %v1754, 1.0
  %v1756 = vrcp.pop %v1755
  %v1757 = vmul.f32 1.0, %v1756
  %v1758 = vadd.f32 %v1739, %v552
  %v1759 = vmul.f32 %v1750, %v1758
  %v1760 = vadd.f32 %v1657, %v1759
  %v1761 = vtanh.pop %v1760
  %v1762 = vsub.f32 1.0, %v1757
  %v1763 = vmul.f32 %v1762, %v1761
  %v1764 = vmul.f32 %v1757, %v1564
  %v1765 = vadd.f32 %v1763, %v1764
  %s1766 = sadd.s32 %s96, 6
  %v1767 = vstv %s1766
  %vm1768 = vcmp.lt.s32.totalorder %v1767, %v95
  %v1769 = vsel %vm1768, 1, 0
  %v1770 = vcvt.s32.f32 %v1769
  %1772 = vset.pattern.permute.xlu0 0
  %1773 = vperm.xlu0 %1772, %v1770
  %v1774 = vpop.permute.xlu0 %1773
  %v1776 = vmul.f32 %v1765, %v1774
  %v1777 = vpack.c.bf16 %v1776, %v1776
  %s1778 = scalar_lea.vmem %s6, 24
  %1779 = vst [vmem:[%s1778] sm:$0xf] %v1777
  %s1780 = scalar_lea.vmem %s0, 28
  %v1781 = vld [vmem:[%s1780] sm:$0xf]
  %1782 = vmatprep.subr.bf16.mxu0 %v196
  %1783 = vmatpush1.bf16.msra.mxu0 %v195
  %1784 = vmatprep.subr.bf16.mxu0 %v199
  %1785 = vmatpush1.bf16.msra.mxu0 %v198
  %1786 = vmatprep.subr.bf16.mxu0 %v202
  %1787 = vmatpush1.bf16.msra.mxu0 %v201
  %1788 = vmatprep.subr.bf16.mxu0 %v205
  %1789 = vmatpush1.bf16.msra.mxu0 %v204
  %1790 = vmatprep.subr.bf16.mxu0 %v208
  %1791 = vmatpush1.bf16.msra.mxu0 %v207
  %1792 = vmatprep.subr.bf16.mxu0 %v211
  %1793 = vmatpush1.bf16.msra.mxu0 %v210
  %1794 = vmatprep.subr.bf16.mxu0 %v214
  %1795 = vmatpush1.bf16.msra.mxu0 %v213
  %1796 = vmatprep.subr.bf16.mxu0 %v217
  %1797 = vmatpush1.bf16.msra.mxu0 %v216
  %1798 = vmatprep.subr.bf16.mxu0 0
  %1799 = vmatpush1.bf16.msra.mxu0 0
  %1800 = vmatprep.subr.bf16.mxu0 0
  %1801 = vmatpush1.bf16.msra.mxu0 0
  %1802 = vmatprep.subr.bf16.mxu0 0
  %1803 = vmatpush1.bf16.msra.mxu0 0
  %1804 = vmatprep.subr.bf16.mxu0 0
  %1805 = vmatpush1.bf16.msra.mxu0 0
  %1806 = vmatprep.subr.bf16.mxu0 0
  %1807 = vmatpush1.bf16.msra.mxu0 0
  %1808 = vmatprep.subr.bf16.mxu0 0
  %1809 = vmatpush1.bf16.msra.mxu0 0
  %1810 = vmatprep.subr.bf16.mxu0 0
  %1811 = vmatpush1.bf16.msra.mxu0 0
  %1812 = vmatprep.subr.bf16.mxu0 0
  %1813 = vmatpush1.bf16.msra.mxu0 0
  %1814 = vmatprep.mubr.bf16.mxu0 0
  %1815 = vmatmul.mubr.bf16.gmra.mrb[0].mxu0 %v1781
  %v1816 = vpop.f32.mrb[0].mxu0
  %v1817 = vadd.f32 %v103, %v1816
  %v1818 = vpop.f32.mrb[0].mxu0
  %v1819 = vadd.f32 %v107, %v1818
  %v1820 = vpop.f32.mrb[0].mxu0
  %v1821 = vpop.f32.mrb[0].mxu0
  %1822 = vdwg.mxu0
  %1823 = vmatprep.subr.bf16.mxu0 0
  %1824 = vmatpush1.bf16.msra.mxu0 %v197
  %1825 = vmatprep.subr.bf16.mxu0 0
  %1826 = vmatpush1.bf16.msra.mxu0 %v200
  %1827 = vmatprep.subr.bf16.mxu0 0
  %1828 = vmatpush1.bf16.msra.mxu0 %v203
  %1829 = vmatprep.subr.bf16.mxu0 0
  %1830 = vmatpush1.bf16.msra.mxu0 %v206
  %1831 = vmatprep.subr.bf16.mxu0 0
  %1832 = vmatpush1.bf16.msra.mxu0 %v209
  %1833 = vmatprep.subr.bf16.mxu0 0
  %1834 = vmatpush1.bf16.msra.mxu0 %v212
  %1835 = vmatprep.subr.bf16.mxu0 0
  %1836 = vmatpush1.bf16.msra.mxu0 %v215
  %1837 = vmatprep.subr.bf16.mxu0 0
  %1838 = vmatpush1.bf16.msra.mxu0 %v218
  %1839 = vmatprep.subr.bf16.mxu0 0
  %1840 = vmatpush1.bf16.msra.mxu0 0
  %1841 = vmatprep.subr.bf16.mxu0 0
  %1842 = vmatpush1.bf16.msra.mxu0 0
  %1843 = vmatprep.subr.bf16.mxu0 0
  %1844 = vmatpush1.bf16.msra.mxu0 0
  %1845 = vmatprep.subr.bf16.mxu0 0
  %1846 = vmatpush1.bf16.msra.mxu0 0
  %1847 = vmatprep.subr.bf16.mxu0 0
  %1848 = vmatpush1.bf16.msra.mxu0 0
  %1849 = vmatprep.subr.bf16.mxu0 0
  %1850 = vmatpush1.bf16.msra.mxu0 0
  %1851 = vmatprep.subr.bf16.mxu0 0
  %1852 = vmatpush1.bf16.msra.mxu0 0
  %1853 = vmatprep.subr.bf16.mxu0 0
  %1854 = vmatpush1.bf16.msra.mxu0 0
  %1855 = vmatprep.mubr.bf16.mxu0 0
  %1856 = vmatmul.mubr.bf16.gmra.mrb[0].mxu0 %v1781
  %v1857 = vpop.f32.mrb[0].mxu0
  %v1858 = vadd.f32 %v111, %v1857
  %v1859 = vpop.f32.mrb[0].mxu0
  %v1860 = vpop.f32.mrb[0].mxu0
  %v1861 = vpop.f32.mrb[0].mxu0
  %1862 = vdwg.mxu0
  %v1863 = vpack.c.bf16 %v1765, %v1765
  %1864 = vmatprep.subr.bf16.mxu0 %v406
  %1865 = vmatpush1.bf16.msra.mxu0 %v405
  %1866 = vmatprep.subr.bf16.mxu0 %v409
  %1867 = vmatpush1.bf16.msra.mxu0 %v408
  %1868 = vmatprep.subr.bf16.mxu0 %v412
  %1869 = vmatpush1.bf16.msra.mxu0 %v411
  %1870 = vmatprep.subr.bf16.mxu0 %v415
  %1871 = vmatpush1.bf16.msra.mxu0 %v414
  %1872 = vmatprep.subr.bf16.mxu0 %v418
  %1873 = vmatpush1.bf16.msra.mxu0 %v417
  %1874 = vmatprep.subr.bf16.mxu0 %v421
  %1875 = vmatpush1.bf16.msra.mxu0 %v420
  %1876 = vmatprep.subr.bf16.mxu0 %v424
  %1877 = vmatpush1.bf16.msra.mxu0 %v423
  %1878 = vmatprep.subr.bf16.mxu0 %v427
  %1879 = vmatpush1.bf16.msra.mxu0 %v426
  %1880 = vmatprep.subr.bf16.mxu0 0
  %1881 = vmatpush1.bf16.msra.mxu0 0
  %1882 = vmatprep.subr.bf16.mxu0 0
  %1883 = vmatpush1.bf16.msra.mxu0 0
  %1884 = vmatprep.subr.bf16.mxu0 0
  %1885 = vmatpush1.bf16.msra.mxu0 0
  %1886 = vmatprep.subr.bf16.mxu0 0
  %1887 = vmatpush1.bf16.msra.mxu0 0
  %1888 = vmatprep.subr.bf16.mxu0 0
  %1889 = vmatpush1.bf16.msra.mxu0 0
  %1890 = vmatprep.subr.bf16.mxu0 0
  %1891 = vmatpush1.bf16.msra.mxu0 0
  %1892 = vmatprep.subr.bf16.mxu0 0
  %1893 = vmatpush1.bf16.msra.mxu0 0
  %1894 = vmatprep.subr.bf16.mxu0 0
  %1895 = vmatpush1.bf16.msra.mxu0 0
  %1896 = vmatprep.mubr.bf16.mxu0 0
  %1897 = vmatmul.mubr.bf16.gmra.mrb[0].mxu0 %v1863
  %v1898 = vpop.f32.mrb[0].mxu0
  %v1899 = vadd.f32 0.0, %v1898
  %v1900 = vpop.f32.mrb[0].mxu0
  %v1901 = vadd.f32 0.0, %v1900
  %v1902 = vpop.f32.mrb[0].mxu0
  %v1903 = vpop.f32.mrb[0].mxu0
  %1904 = vdwg.mxu0
  %1905 = vmatprep.subr.bf16.mxu0 0
  %1906 = vmatpush1.bf16.msra.mxu0 %v407
  %1907 = vmatprep.subr.bf16.mxu0 0
  %1908 = vmatpush1.bf16.msra.mxu0 %v410
  %1909 = vmatprep.subr.bf16.mxu0 0
  %1910 = vmatpush1.bf16.msra.mxu0 %v413
  %1911 = vmatprep.subr.bf16.mxu0 0
  %1912 = vmatpush1.bf16.msra.mxu0 %v416
  %1913 = vmatprep.subr.bf16.mxu0 0
  %1914 = vmatpush1.bf16.msra.mxu0 %v419
  %1915 = vmatprep.subr.bf16.mxu0 0
  %1916 = vmatpush1.bf16.msra.mxu0 %v422
  %1917 = vmatprep.subr.bf16.mxu0 0
  %1918 = vmatpush1.bf16.msra.mxu0 %v425
  %1919 = vmatprep.subr.bf16.mxu0 0
  %1920 = vmatpush1.bf16.msra.mxu0 %v428
  %1921 = vmatprep.subr.bf16.mxu0 0
  %1922 = vmatpush1.bf16.msra.mxu0 0
  %1923 = vmatprep.subr.bf16.mxu0 0
  %1924 = vmatpush1.bf16.msra.mxu0 0
  %1925 = vmatprep.subr.bf16.mxu0 0
  %1926 = vmatpush1.bf16.msra.mxu0 0
  %1927 = vmatprep.subr.bf16.mxu0 0
  %1928 = vmatpush1.bf16.msra.mxu0 0
  %1929 = vmatprep.subr.bf16.mxu0 0
  %1930 = vmatpush1.bf16.msra.mxu0 0
  %1931 = vmatprep.subr.bf16.mxu0 0
  %1932 = vmatpush1.bf16.msra.mxu0 0
  %1933 = vmatprep.subr.bf16.mxu0 0
  %1934 = vmatpush1.bf16.msra.mxu0 0
  %1935 = vmatprep.subr.bf16.mxu0 0
  %1936 = vmatpush1.bf16.msra.mxu0 0
  %1937 = vmatprep.mubr.bf16.mxu0 0
  %1938 = vmatmul.mubr.bf16.gmra.mrb[0].mxu0 %v1863
  %v1939 = vpop.f32.mrb[0].mxu0
  %v1940 = vadd.f32 0.0, %v1939
  %v1941 = vpop.f32.mrb[0].mxu0
  %v1942 = vpop.f32.mrb[0].mxu0
  %v1943 = vpop.f32.mrb[0].mxu0
  %1944 = vdwg.mxu0
  %v1945 = vadd.f32 %v1817, %v1899
  %v1946 = vxor.u32 %v1945, 2147483648
  %v1947 = vmul.f32 %v1946, 1.442695
  %v1948 = vpow.pop %v1947
  %v1949 = vadd.f32 %v1948, 1.0
  %v1950 = vrcp.pop %v1949
  %v1951 = vmul.f32 1.0, %v1950
  %v1952 = vadd.f32 %v1819, %v1901
  %v1953 = vxor.u32 %v1952, 2147483648
  %v1954 = vmul.f32 %v1953, 1.442695
  %v1955 = vpow.pop %v1954
  %v1956 = vadd.f32 %v1955, 1.0
  %v1957 = vrcp.pop %v1956
  %v1958 = vmul.f32 1.0, %v1957
  %v1959 = vadd.f32 %v1940, %v552
  %v1960 = vmul.f32 %v1951, %v1959
  %v1961 = vadd.f32 %v1858, %v1960
  %v1962 = vtanh.pop %v1961
  %v1963 = vsub.f32 1.0, %v1958
  %v1964 = vmul.f32 %v1963, %v1962
  %v1965 = vmul.f32 %v1958, %v1765
  %v1966 = vadd.f32 %v1964, %v1965
  %s1967 = sadd.s32 %s96, 7
  %v1968 = vstv %s1967
  %vm1969 = vcmp.lt.s32.totalorder %v1968, %v95
  %v1970 = vsel %vm1969, 1, 0
  %v1971 = vcvt.s32.f32 %v1970
  %1973 = vset.pattern.permute.xlu0 0
  %1974 = vperm.xlu0 %1973, %v1971
  %v1975 = vpop.permute.xlu0 %1974
  %v1977 = vmul.f32 %v1966, %v1975
  %v1978 = vpack.c.bf16 %v1977, %v1977
  %s1979 = scalar_lea.vmem %s6, 28
  %1980 = vst [vmem:[%s1979] sm:$0xf] %v1978
  %1981 = vst [vmem:[#allocation2] sm:$0xff] %v1966
  // Predicated region
  $region30: #{gru4rec_forward.2} parent=0 // pred_check
    _
  $region31: #{gru4rec_forward.2} parent=0 // pred_check_branch
    %1983 = sbr.rel (0) target = $region33
  $region32: #{gru4rec_forward.2} parent=0 // pred_region
    _
  $region33: #{gru4rec_forward.2} parent=0 // pred_fallthru
    _
  // Predicated region
  $region34: #{gru4rec_forward.2} parent=0 // pred_check
    _
  $region35: #{gru4rec_forward.2} parent=0 // pred_check_branch
    %1985 = sbr.rel (0) target = $region37
  $region36: #{gru4rec_forward.2} parent=0 // pred_region
    _
  $region37: #{gru4rec_forward.2} parent=0 // pred_fallthru
    _

</llo_original>
